<compile_context>
chip_gen: v6e
topology: v6e:2x2x1
jax: 0.10.0
libtpu: 0.0.40
codegen_flags: <defaults>
</compile_context>

<pallas_src>
import functools

import jax
import jax.numpy as jnp
from jax.experimental import pallas as pl
from jax.experimental.pallas import tpu as pltpu

_BN_EPS = 1e-5

# Scoped-VMEM budget, re-derived per TPU generation (v7x: 64 MiB physical,
# v5e/v6e: 128 MiB).  Falls back to a conservative 32 MiB.
try:
    _cap = getattr(pltpu.get_tpu_info(), "vmem_capacity_bytes", None)
    _VMEM_LIMIT = int(min(_cap * 3 // 4, 96 * 1024 * 1024)) if _cap else 32 * 1024 * 1024
except Exception:  # pragma: no cover - conservative fallback
    _VMEM_LIMIT = 32 * 1024 * 1024


# ---------------------------------------------------------------------------
# Fused direct-conv + BatchNorm (+ residual add) (+ ReLU) kernel.
#
# grid = (Cout // tn,): each grid step owns one output-channel tile and the
# ENTIRE batch, so
#   * every MXU matmul sees M = N*ho*wo rows,
#   * the weight tile is loaded exactly once,
#   * per-channel BatchNorm statistics over the whole batch are available in
#     VMEM and BN / residual / ReLU are applied before the single bf16 write.
# ---------------------------------------------------------------------------
def _conv_bn_kernel(*refs, kh, kw, ho, wo, pad, relu, has_res):
    n_in = 5 if has_res else 4
    x_ref, w_ref, g_ref, b_ref = refs[0], refs[1], refs[2], refs[3]
    r_ref = refs[4] if has_res else None
    o_ref = refs[n_in]
    scratch = refs[n_in + 1:]
    if pad:
        xp_ref, acc_ref = scratch
    else:
        xp_ref, acc_ref = x_ref, scratch[0]

    n, h, w, cin = x_ref.shape
    tn = o_ref.shape[-1]
    m = n * ho * wo

    if pad:
        # Zero-padded copy of the input, kept entirely in VMEM (no HBM copy).
        xp_ref[...] = jnp.zeros(xp_ref.shape, xp_ref.dtype)
        xp_ref[:, pl.ds(pad, h), pl.ds(pad, w), :] = x_ref[...]

    # Accumulate the kh*kw shifted-window matmuls into the f32 VMEM scratch.
    taps = [(ki, kj) for ki in range(kh) for kj in range(kw)]
    for idx, (ki, kj) in enumerate(taps):
        patch = xp_ref[:, pl.ds(ki, ho), pl.ds(kj, wo), :]      # (N, ho, wo, cin)
        patch = patch.reshape(m, cin)
        w_slc = w_ref[pl.ds((ki * kw + kj) * cin, cin), :]      # (cin, tn)
        prod = jnp.dot(patch, w_slc, preferred_element_type=jnp.float32)
        if idx == 0:
            acc_ref[...] = prod
        else:
            acc_ref[...] += prod

    # BatchNorm (training-mode batch stats, biased variance, single pass),
    # fused residual add and ReLU -- all before the one bf16 store to HBM.
    acc = acc_ref[...]                                           # (M, tn) f32
    inv_m = 1.0 / m
    mean = jnp.sum(acc, axis=0, keepdims=True) * inv_m
    ex2 = jnp.sum(acc * acc, axis=0, keepdims=True) * inv_m
    var = jnp.maximum(ex2 - mean * mean, 0.0)
    y = (acc - mean) * jax.lax.rsqrt(var + _BN_EPS) * g_ref[...] + b_ref[...]
    if has_res:
        y = y + r_ref[...].astype(jnp.float32).reshape(m, tn)
    if relu:
        y = jnp.maximum(y, 0.0)
    o_ref[...] = y.reshape(o_ref.shape).astype(o_ref.dtype)


def _conv_bn_pallas(x, w_mat, gamma, beta, residual, *, kh, kw, ho, wo, pad, relu):
    n, h, w, cin = x.shape
    k, cout = w_mat.shape
    assert k == kh * kw * cin, (k, kh, kw, cin)
    # TODO(synk): layer1/layer2 tiles (tn=64/128) produce lane-sparse stores on
    # the 256-wide v6e/v7x datapath; packing two output columns per lane would
    # recover store / MXU-column density.
    tn = 256 if cout % 256 == 0 else cout
    m = n * ho * wo

    in_specs = [
        pl.BlockSpec((n, h, w, cin), lambda j: (0, 0, 0, 0)),
        pl.BlockSpec((k, tn), lambda j: (0, j)),
        pl.BlockSpec((1, tn), lambda j: (0, j)),
        pl.BlockSpec((1, tn), lambda j: (0, j)),
    ]
    args = [x.astype(jnp.bfloat16), w_mat, gamma, beta]
    if residual is not None:
        in_specs.append(pl.BlockSpec((n, ho, wo, tn), lambda j: (0, 0, 0, j)))
        args.append(residual.astype(jnp.bfloat16))

    scratch = []
    if pad:
        scratch.append(pltpu.VMEM((n, h + 2 * pad, w + 2 * pad, cin), jnp.bfloat16))
    scratch.append(pltpu.VMEM((m, tn), jnp.float32))

    kernel = functools.partial(_conv_bn_kernel, kh=kh, kw=kw, ho=ho, wo=wo,
                               pad=pad, relu=relu, has_res=residual is not None)
    return pl.pallas_call(
        kernel,
        grid=(cout // tn,),
        out_shape=jax.ShapeDtypeStruct((n, ho, wo, cout), jnp.bfloat16),
        in_specs=in_specs,
        out_specs=pl.BlockSpec((n, ho, wo, tn), lambda j: (0, 0, 0, j)),
        scratch_shapes=scratch,
        compiler_params=pltpu.CompilerParams(
            dimension_semantics=("parallel",),
            vmem_limit_bytes=_VMEM_LIMIT),
    )(*args)


def conv_bn(x, cp, gamma, beta, residual=None, relu=True):
    """Fused Conv2d (no bias) + BatchNorm2d (+ residual) (+ ReLU), NHWC bf16."""
    n, h, w, c = x.shape
    mode = cp["mode"]
    if mode == "s1":            # 3x3 stride-1 pad-1 ('same'), pad done in VMEM
        return _conv_bn_pallas(x, cp["w"], gamma, beta, residual,
                               kh=3, kw=3, ho=h, wo=w, pad=1, relu=relu)
    if mode == "stem":          # Cin=3: tiny im2col in XLA -> ONE K=27 matmul
        xp = jnp.pad(x, ((0, 0), (1, 1), (1, 1), (0, 0)))
        cols = jnp.concatenate(
            [xp[:, ki:ki + h, kj:kj + w, :] for ki in range(3) for kj in range(3)],
            axis=-1)
        return _conv_bn_pallas(cols, cp["w"], gamma, beta, residual,
                               kh=1, kw=1, ho=h, wo=w, pad=0, relu=relu)
    if mode == "s2_3x3":        # 3x3 stride-2 pad-1 == 2x2 stride-1 over 4 phases
        # TODO(synk): the pad + 4-phase space-to-depth is still one XLA copy in
        # HBM; in-kernel strided loads would remove it.
        xp0 = jnp.pad(x, ((0, 0), (1, 1), (1, 1), (0, 0)))
        phases = [xp0[:, a::2, b::2, :] for a in (0, 1) for b in (0, 1)]
        xp = jnp.concatenate(phases, axis=-1)            # (N, H/2+1, W/2+1, 4C)
        return _conv_bn_pallas(xp, cp["w"], gamma, beta, residual,
                               kh=2, kw=2, ho=h // 2, wo=w // 2, pad=0, relu=relu)
    # mode == "s2_1x1": 1x1 stride-2 downsample conv
    xs = x[:, ::2, ::2, :]
    return _conv_bn_pallas(xs, cp["w"], gamma, beta, residual,
                           kh=1, kw=1, ho=(h + 1) // 2, wo=(w + 1) // 2,
                           pad=0, relu=relu)


# ---------------------------------------------------------------------------
# Fused tail: avg-pool -> head(Linear, BN, ReLU) -> projector(MLP) -- 1 kernel
# ---------------------------------------------------------------------------
def _tail_kernel(x_ref, hw_ref, hg_ref, hb_ref, p1_ref, pg_ref, pb_ref,
                 p2_ref, p2b_ref, proj_ref, emb_ref):
    x = x_ref[...].astype(jnp.float32)                 # (N, HW, 512)
    pooled = jnp.mean(x, axis=1)                       # AdaptiveAvgPool2d(1)+Flatten

    def bn_relu(h, g, b):
        mean = jnp.mean(h, axis=0, keepdims=True)
        var = jnp.mean(h * h, axis=0, keepdims=True) - mean * mean
        var = jnp.maximum(var, 0.0)
        return jnp.maximum((h - mean) * jax.lax.rsqrt(var + _BN_EPS) * g + b, 0.0)

    emb = bn_relu(jnp.dot(pooled, hw_ref[...], preferred_element_type=jnp.float32),
                  hg_ref[...], hb_ref[...])
    emb_ref[...] = emb
    z = bn_relu(jnp.dot(emb, p1_ref[...], preferred_element_type=jnp.float32),
                pg_ref[...], pb_ref[...])
    proj_ref[...] = (jnp.dot(z, p2_ref[...], preferred_element_type=jnp.float32)
                     + p2b_ref[...])


def head_and_projector(feat, p):
    n, h, w, c = feat.shape
    x = feat.reshape(n, h * w, c)
    hidden = p["head_fc_w"].shape[1]
    proj_dim = p["proj_fc2_w"].shape[1]
    v = lambda shape: pl.BlockSpec(shape, lambda i: (0,) * len(shape))
    proj, emb = pl.pallas_call(
        _tail_kernel,
        grid=(1,),
        out_shape=(jax.ShapeDtypeStruct((n, proj_dim), jnp.float32),
                   jax.ShapeDtypeStruct((n, hidden), jnp.float32)),
        in_specs=[
            v((n, h * w, c)),
            v((c, hidden)), v((1, hidden)), v((1, hidden)),
            v((hidden, hidden)), v((1, hidden)), v((1, hidden)),
            v((hidden, proj_dim)), v((1, proj_dim)),
        ],
        out_specs=(v((n, proj_dim)), v((n, hidden))),
        compiler_params=pltpu.CompilerParams(
            dimension_semantics=("arbitrary",),
            vmem_limit_bytes=_VMEM_LIMIT),
    )(x, p["head_fc_w"], p["head_bn_g"], p["head_bn_b"],
      p["proj_fc1_w"], p["proj_bn_g"], p["proj_bn_b"],
      p["proj_fc2_w"], p["proj_fc2_b"])
    return proj, emb


# ---------------------------------------------------------------------------
# ResNet18 structure
# ---------------------------------------------------------------------------
def basic_block(x, bp):
    out = conv_bn(x, bp["conv1"], bp["bn1_g"], bp["bn1_b"], relu=True)
    identity = x
    if bp["down"] is not None:
        identity = conv_bn(x, bp["down"], bp["down_g"], bp["down_b"], relu=False)
    # conv2 + BN + residual add + ReLU in one kernel.
    return conv_bn(out, bp["conv2"], bp["bn2_g"], bp["bn2_b"],
                   residual=identity, relu=True)


def resnet18_forward(x_nchw, p):
    """Matches ResNet18.forward: returns (projector(embeddings), embeddings)."""
    x = jnp.transpose(x_nchw, (0, 2, 3, 1)).astype(jnp.bfloat16)  # NCHW -> NHWC
    # conv1 (3->64, k=3, pad=1, stride=1, no bias) + bn + relu  (maxpool removed)
    x = conv_bn(x, p["conv1"], p["bn1_g"], p["bn1_b"], relu=True)
    for layer_name in ("layer1", "layer2", "layer3", "layer4"):
        for bp in p[layer_name]:
            x = basic_block(x, bp)
    return head_and_projector(x, p)


# ---------------------------------------------------------------------------
# One-time parameter preparation (weight re-layout / bf16 cast done ONCE).
# ---------------------------------------------------------------------------
def _prep_conv(w, stride):
    cout, cin, kh, kw = w.shape
    if stride == 1 and kh == 3 and cin <= 16:
        # Stem conv: wrapper builds a (N,H,W,9*cin) im2col tensor in XLA (tiny
        # at Cin=3), so the kernel runs a single K=9*cin MXU contraction.
        mat = jnp.transpose(w, (2, 3, 1, 0)).reshape(kh * kw * cin, cout)
        return {"mode": "stem", "w": mat.astype(jnp.bfloat16)}
    if stride == 1:
        mat = jnp.transpose(w, (2, 3, 1, 0)).reshape(kh * kw * cin, cout)
        return {"mode": "s1", "w": mat.astype(jnp.bfloat16)}
    if kh == 1:  # 1x1 stride-2 downsample
        mat = jnp.transpose(w, (2, 3, 1, 0)).reshape(cin, cout)
        return {"mode": "s2_1x1", "w": mat.astype(jnp.bfloat16)}
    # 3x3 stride-2 pad-1: fold the stride into a stride-1 2x2 conv over the
    # 4-phase space-to-depth decomposition of the padded input.
    w4 = jnp.zeros((2, 2, 4, cin, cout), jnp.float32)
    for i in range(3):
        for j in range(3):
            di, a = i // 2, i % 2
            dj, b = j // 2, j % 2
            w4 = w4.at[di, dj, a * 2 + b].set(jnp.transpose(w[:, :, i, j]))
    return {"mode": "s2_3x3",
            "w": w4.reshape(2 * 2 * 4 * cin, cout).astype(jnp.bfloat16)}


def _prep_bn(v):
    return v.reshape(1, -1).astype(jnp.float32)


def _prep_block(bp):
    out = {
        "conv1": _prep_conv(bp["conv1_w"], bp["stride"]),
        "bn1_g": _prep_bn(bp["bn1_g"]), "bn1_b": _prep_bn(bp["bn1_b"]),
        "conv2": _prep_conv(bp["conv2_w"], 1),
        "bn2_g": _prep_bn(bp["bn2_g"]), "bn2_b": _prep_bn(bp["bn2_b"]),
        "down": None, "down_g": None, "down_b": None,
    }
    if bp["down_w"] is not None:
        out["down"] = _prep_conv(bp["down_w"], bp["stride"])
        out["down_g"] = _prep_bn(bp["down_g"])
        out["down_b"] = _prep_bn(bp["down_b"])
    return out


def prepare_params(p):
    q = {
        "conv1": _prep_conv(p["conv1_w"], 1),
        "bn1_g": _prep_bn(p["bn1_g"]), "bn1_b": _prep_bn(p["bn1_b"]),
        "head_fc_w": jnp.transpose(p["head_fc_w"]).astype(jnp.float32),
        "head_bn_g": _prep_bn(p["head_bn_g"]), "head_bn_b": _prep_bn(p["head_bn_b"]),
        "proj_fc1_w": jnp.transpose(p["proj_fc1_w"]).astype(jnp.float32),
        "proj_bn_g": _prep_bn(p["proj_bn_g"]), "proj_bn_b": _prep_bn(p["proj_bn_b"]),
        "proj_fc2_w": jnp.transpose(p["proj_fc2_w"]).astype(jnp.float32),
        "proj_fc2_b": p["proj_fc2_b"].reshape(1, -1).astype(jnp.float32),
    }
    for name in ("layer1", "layer2", "layer3", "layer4"):
        q[name] = [_prep_block(bp) for bp in p[name]]
    return q


# ---------------------------------------------------------------------------
# Deterministic parameter initialization (shapes follow torchvision resnet18
# with the emp_ssl modifications; values are synthetic, PyTorch layout).
# ---------------------------------------------------------------------------
def init_params(key, hidden_dim=32, projection_dim=16):
    keys = iter(jax.random.split(key, 64))

    def conv_w(cout, cin, k):
        fan_in = cin * k * k
        return (jax.random.normal(next(keys), (cout, cin, k, k), jnp.float32)
                * (2.0 / fan_in) ** 0.5)

    def lin_w(cout, cin):
        return (jax.random.normal(next(keys), (cout, cin), jnp.float32)
                * (1.0 / cin) ** 0.5)

    def bn(c):
        return jnp.ones((c,), jnp.float32), jnp.zeros((c,), jnp.float32)

    def make_block(cin, cout, stride):
        bn1_g, bn1_b = bn(cout)
        bn2_g, bn2_b = bn(cout)
        bp = {
            "stride": stride,
            "conv1_w": conv_w(cout, cin, 3), "bn1_g": bn1_g, "bn1_b": bn1_b,
            "conv2_w": conv_w(cout, cout, 3), "bn2_g": bn2_g, "bn2_b": bn2_b,
            "down_w": None, "down_g": None, "down_b": None,
        }
        if stride != 1 or cin != cout:
            dg, db = bn(cout)
            bp["down_w"] = conv_w(cout, cin, 1)
            bp["down_g"], bp["down_b"] = dg, db
        return bp

    bn1_g, bn1_b = bn(64)
    params = {
        "conv1_w": conv_w(64, 3, 3), "bn1_g": bn1_g, "bn1_b": bn1_b,
        "layer1": [make_block(64, 64, 1), make_block(64, 64, 1)],
        "layer2": [make_block(64, 128, 2), make_block(128, 128, 1)],
        "layer3": [make_block(128, 256, 2), make_block(256, 256, 1)],
        "layer4": [make_block(256, 512, 2), make_block(512, 512, 1)],
    }
    head_bn_g, head_bn_b = bn(hidden_dim)
    proj_bn_g, proj_bn_b = bn(hidden_dim)
    params.update({
        "head_fc_w": lin_w(hidden_dim, 512),
        "head_bn_g": head_bn_g, "head_bn_b": head_bn_b,
        "proj_fc1_w": lin_w(hidden_dim, hidden_dim),
        "proj_bn_g": proj_bn_g, "proj_bn_b": proj_bn_b,
        "proj_fc2_w": lin_w(projection_dim, hidden_dim),
        "proj_fc2_b": jnp.zeros((projection_dim,), jnp.float32),
    })
    return params


if __name__ == "__main__":
    HIDDEN_DIM = 32
    PROJECTION_DIM = 16

    key = jax.random.PRNGKey(0)
    pkey, xkey = jax.random.split(key)
    raw_params = init_params(pkey, hidden_dim=HIDDEN_DIM,
                             projection_dim=PROJECTION_DIM)
    params = prepare_params(raw_params)   # one-time weight re-layout (not per step)

    # Small input consistent with the module: NCHW, 3 input channels.
    x = jax.random.normal(xkey, (2, 3, 16, 16), jnp.float32)

    proj, emb = resnet18_forward(x, params)
    jax.block_until_ready((proj, emb))

    assert proj.shape == (2, PROJECTION_DIM), proj.shape
    assert emb.shape == (2, HIDDEN_DIM), emb.shape
    assert proj.dtype == jnp.float32 and emb.dtype == jnp.float32
    print("KERNEL_OK")
</pallas_src>

<mosaic_0001>
module attributes {stable_mosaic.version = 11 : i64} {
  func.func @_conv_bn_kernel(%arg0: i32, %arg1: memref<2x16x16x27xbf16, #tpu.memory_space<vmem>>, %arg2: memref<27x64xbf16, #tpu.memory_space<vmem>>, %arg3: memref<1x64xf32, #tpu.memory_space<vmem>>, %arg4: memref<1x64xf32, #tpu.memory_space<vmem>>, %arg5: memref<2x16x16x64xbf16, #tpu.memory_space<vmem>>, %arg6: memref<512x64xf32, #tpu.memory_space<vmem>>) attributes {dimension_semantics = [#tpu.dimension_semantics<parallel>], iteration_bounds = array<i64: 1>, scalar_prefetch = 0 : i64, scratch_operands = 1 : i64, tpu.core_type = #tpu.core_type<tc>, window_params = [{pipeline_mode = #tpu.pipeline_mode<synchronous>, transform_indices = @transform_0, window_bounds = array<i64: 2, 16, 16, 27>}, {transform_indices = @transform_1, window_bounds = array<i64: 27, 64>}, {transform_indices = @transform_2, window_bounds = array<i64: 1, 64>}, {transform_indices = @transform_3, window_bounds = array<i64: 1, 64>}, {transform_indices = @transform_4, window_bounds = array<i64: 2, 16, 16, 64>}]} {
    %c0 = arith.constant 0 : index
    %c0_0 = arith.constant 0 : index
    %c0_1 = arith.constant 0 : index
    %c0_2 = arith.constant 0 : index
    %0 = vector.load %arg1[%c0, %c0_0, %c0_1, %c0_2] : memref<2x16x16x27xbf16, #tpu.memory_space<vmem>>, vector<2x16x16x27xbf16>
    %1 = vector.shape_cast %0 : vector<2x16x16x27xbf16> to vector<512x27xbf16>
    %c0_3 = arith.constant 0 : index
    %c0_4 = arith.constant 0 : index
    %2 = vector.load %arg2[%c0_3, %c0_4] : memref<27x64xbf16, #tpu.memory_space<vmem>>, vector<27x64xbf16>
    %cst = arith.constant dense<0.000000e+00> : vector<512x64xf32>
    %3 = tpu.matmul %1, %2, %cst {dimension_numbers = #tpu.dot_dimension_numbers<[1], [0], [0], [1], [0, 0, 1, 1], [], []>} : vector<512x27xbf16>, vector<27x64xbf16>, vector<512x64xf32> -> vector<512x64xf32>
    %c0_5 = arith.constant 0 : index
    %c0_6 = arith.constant 0 : index
    %4 = vector.load %arg6[%c0_5, %c0_6] : memref<512x64xf32, #tpu.memory_space<vmem>>, vector<512x64xf32>
    tpu.vector_store %arg6[%c0_5, %c0_6], %3 {strides = array<i32>} : memref<512x64xf32, #tpu.memory_space<vmem>>, vector<512x64xf32>,
    %c0_7 = arith.constant 0 : index
    %c0_8 = arith.constant 0 : index
    %5 = vector.load %arg6[%c0_7, %c0_8] : memref<512x64xf32, #tpu.memory_space<vmem>>, vector<512x64xf32>
    %cst_9 = arith.constant dense<0.000000e+00> : vector<64xf32>
    %6 = vector.multi_reduction <add>, %5, %cst_9 [0] : vector<512x64xf32> to vector<64xf32>
    %7 = vector.shape_cast %6 : vector<64xf32> to vector<1x64xf32>
    %cst_10 = arith.constant 0.001953125 : f32
    %8 = vector.broadcast %cst_10 : f32 to vector<1x64xf32>
    %9 = arith.mulf %7, %8 : vector<1x64xf32>
    %10 = arith.mulf %5, %5 : vector<512x64xf32>
    %cst_11 = arith.constant dense<0.000000e+00> : vector<64xf32>
    %11 = vector.multi_reduction <add>, %10, %cst_11 [0] : vector<512x64xf32> to vector<64xf32>
    %12 = vector.shape_cast %11 : vector<64xf32> to vector<1x64xf32>
    %cst_12 = arith.constant 0.001953125 : f32
    %13 = vector.broadcast %cst_12 : f32 to vector<1x64xf32>
    %14 = arith.mulf %12, %13 : vector<1x64xf32>
    %15 = arith.mulf %9, %9 : vector<1x64xf32>
    %16 = arith.subf %14, %15 : vector<1x64xf32>
    %cst_13 = arith.constant 0.000000e+00 : f32
    %17 = vector.broadcast %cst_13 : f32 to vector<1x64xf32>
    %18 = arith.maximumf %16, %17 : vector<1x64xf32>
    %19 = vector.broadcast %9 : vector<1x64xf32> to vector<512x64xf32>
    %20 = arith.subf %5, %19 : vector<512x64xf32>
    %cst_14 = arith.constant 9.99999974E-6 : f32
    %21 = vector.broadcast %cst_14 : f32 to vector<1x64xf32>
    %22 = arith.addf %18, %21 : vector<1x64xf32>
    %23 = math.rsqrt %22 : vector<1x64xf32>
    %24 = vector.broadcast %23 : vector<1x64xf32> to vector<512x64xf32>
    %25 = arith.mulf %20, %24 : vector<512x64xf32>
    %c0_15 = arith.constant 0 : index
    %c0_16 = arith.constant 0 : index
    %26 = vector.load %arg3[%c0_15, %c0_16] : memref<1x64xf32, #tpu.memory_space<vmem>>, vector<1x64xf32>
    %27 = vector.broadcast %26 : vector<1x64xf32> to vector<512x64xf32>
    %28 = arith.mulf %25, %27 : vector<512x64xf32>
    %c0_17 = arith.constant 0 : index
    %c0_18 = arith.constant 0 : index
    %29 = vector.load %arg4[%c0_17, %c0_18] : memref<1x64xf32, #tpu.memory_space<vmem>>, vector<1x64xf32>
    %30 = vector.broadcast %29 : vector<1x64xf32> to vector<512x64xf32>
    %31 = arith.addf %28, %30 : vector<512x64xf32>
    %cst_19 = arith.constant 0.000000e+00 : f32
    %32 = vector.broadcast %cst_19 : f32 to vector<512x64xf32>
    %33 = arith.maximumf %31, %32 : vector<512x64xf32>
    %34 = vector.shape_cast %33 : vector<512x64xf32> to vector<2x16x16x64xf32>
    %35 = arith.truncf %34 : vector<2x16x16x64xf32> to vector<2x16x16x64xbf16>
    %c0_20 = arith.constant 0 : index
    %c0_21 = arith.constant 0 : index
    %c0_22 = arith.constant 0 : index
    %c0_23 = arith.constant 0 : index
    %36 = vector.load %arg5[%c0_20, %c0_21, %c0_22, %c0_23] : memref<2x16x16x64xbf16, #tpu.memory_space<vmem>>, vector<2x16x16x64xbf16>
    tpu.vector_store %arg5[%c0_20, %c0_21, %c0_22, %c0_23], %35 {strides = array<i32>} : memref<2x16x16x64xbf16, #tpu.memory_space<vmem>>, vector<2x16x16x64xbf16>,
    return
  }
  func.func @transform_0(%arg0: i32) -> (i32, i32, i32, i32) {
    %c0_i32 = arith.constant 0 : i32
    %c0_i32_0 = arith.constant 0 : i32
    %c0_i32_1 = arith.constant 0 : i32
    %c0_i32_2 = arith.constant 0 : i32
    %c0_i32_3 = arith.constant 0 : i32
    return %c0_i32, %c0_i32_0, %c0_i32_1, %c0_i32_2 : i32, i32, i32, i32
  }
  func.func @transform_1(%arg0: i32) -> (i32, i32) {
    %c0_i32 = arith.constant 0 : i32
    %c0_i32_0 = arith.constant 0 : i32
    return %c0_i32, %arg0 : i32, i32
  }
  func.func @transform_2(%arg0: i32) -> (i32, i32) {
    %c0_i32 = arith.constant 0 : i32
    %c0_i32_0 = arith.constant 0 : i32
    return %c0_i32, %arg0 : i32, i32
  }
  func.func @transform_3(%arg0: i32) -> (i32, i32) {
    %c0_i32 = arith.constant 0 : i32
    %c0_i32_0 = arith.constant 0 : i32
    return %c0_i32, %arg0 : i32, i32
  }
  func.func @transform_4(%arg0: i32) -> (i32, i32, i32, i32) {
    %c0_i32 = arith.constant 0 : i32
    %c0_i32_0 = arith.constant 0 : i32
    %c0_i32_1 = arith.constant 0 : i32
    %c0_i32_2 = arith.constant 0 : i32
    return %c0_i32, %c0_i32_0, %c0_i32_1, %arg0 : i32, i32, i32, i32
  }
}

</mosaic_0001>

<llo_original>
// kernel: tpu_custom_call.1
$region0: #{tpu_custom_call.1}
  #allocation0 [shape = 'u32[]', space=smem, size = 0x4, offset = 0x4, fixed_abs, tag = 'smem constant byte address 0x4 - core index']
  #allocation1 [shape = 'u32[144,128]{1,0:T(1,128)}', space=vmem, size = 0x12000, scoped, tag = 'internal scratch']
  #allocation2 [shape = 'f32[512,64]{1,0:T(8,128)}', space=vmem, size = 0x40000, scoped, tag = 'scratch operand']
  %s0 = inlined_call_operand.hbm [shape: bf16[2,16,16,27], index: 0, kind: input, shape index: {}]
  %s1 = inlined_call_operand.hbm [shape: bf16[27,64], index: 1, kind: input, shape index: {}]
  %s2 = inlined_call_operand.vmem [shape: f32[1,64], index: 2, kind: input, shape index: {}]
  %s3 = inlined_call_operand.vmem [shape: f32[1,64], index: 3, kind: input, shape index: {}]
  %s4 = inlined_call_operand.hbm [shape: bf16[2,16,16,64], index: 4, kind: output, shape index: {}]
  %s5 = sld [smem:[#allocation0]]
  $region34: #{tpu_custom_call.1} parent=0
    _
  %s7 = ssub.s32 1, %s5
  %s8 = scalar_select 0, %s7, %s5
  $region1: #{tpu_custom_call.1} parent=0
    #allocation3 [shape = 'u8[131072]{0}', space=vmem, size = 0x20000, scoped, tag = 'input window, operand 0, single buffered']
    #allocation4 [shape = 's32[1]{0}', space=sflag, size = 0x4, scoped, tag = 'scoped memory for tpu_custom_call.1']
    #allocation5 [shape = 's32[1]{0}', space=sflag, size = 0x4, scoped, tag = 'scoped memory for tpu_custom_call.1']
    #allocation6 [shape = 'u8[8192]{0}', space=vmem, size = 0x2000, scoped, tag = 'input window, operand 1, single buffered']
    #allocation7 [shape = 's32[1]{0}', space=sflag, size = 0x4, scoped, tag = 'scoped memory for tpu_custom_call.1']
    #allocation8 [shape = 'u8[131072]{0}', space=vmem, size = 0x20000, scoped, tag = 'output window, operand 0, single buffered']
    %9 = vsyncpa [#allocation4], 0
    %10 = vsyncpa [#allocation7], 0
    %11 = vsyncpa [#allocation5], 0
    // Predicated region
    $region2: #{tpu_custom_call.1} parent=1 // pred_check
      _
    $region3: #{tpu_custom_call.1} parent=1 // pred_check_branch
      %13 = sbr.rel (0) target = $region5
    $region4: #{tpu_custom_call.1} parent=1 // pred_region
      %s15 = ssub.s32 4096, 4096
      %16 = vsyncadd [#allocation4], %s15
      %s17 = sshll.u32 [#allocation3], 4
      %s18 = int_to_ptr.vmem [resolvable:$true] %s17
      %23 = dma.hbm_to_vmem [thread:$0]  %s0, 4096, %s18, [#allocation4], 64, 64, 4
    $region5: #{tpu_custom_call.1} parent=1 // pred_fallthru
      _
    // Predicated region
    $region6: #{tpu_custom_call.1} parent=1 // pred_check
      _
    $region7: #{tpu_custom_call.1} parent=1 // pred_check_branch
      %25 = sbr.rel (0) target = $region9
    $region8: #{tpu_custom_call.1} parent=1 // pred_region
      %s27 = ssub.s32 256, 256
      %28 = vsyncadd [#allocation7], %s27
      %s29 = sshll.u32 [#allocation6], 4
      %s30 = int_to_ptr.vmem [resolvable:$true] %s29
      %35 = dma.hbm_to_vmem [thread:$0]  %s1, 256, %s30, [#allocation7], 64, 64, 4
    $region9: #{tpu_custom_call.1} parent=1 // pred_fallthru
      _
    // Predicated region
    $region10: #{tpu_custom_call.1} parent=1 // pred_check
      _
    $region11: #{tpu_custom_call.1} parent=1 // pred_check_branch
      %37 = sbr.rel (0) target = $region13
    $region12: #{tpu_custom_call.1} parent=1 // pred_region
      _
    $region13: #{tpu_custom_call.1} parent=1 // pred_fallthru
      _
    // Predicated region
    $region14: #{tpu_custom_call.1} parent=1 // pred_check
      _
    $region15: #{tpu_custom_call.1} parent=1 // pred_check_branch
      %39 = sbr.rel (0) target = $region17
    $region16: #{tpu_custom_call.1} parent=1 // pred_region
      _
    $region17: #{tpu_custom_call.1} parent=1 // pred_fallthru
      _
    // Predicated region
    $region18: #{tpu_custom_call.1} parent=1 // pred_check
      _
    $region19: #{tpu_custom_call.1} parent=1 // pred_check_branch
      %41 = sbr.rel (0) target = $region21
    $region20: #{tpu_custom_call.1} parent=1 // pred_region
      %42 = dma.done [#allocation4], 4096
    $region21: #{tpu_custom_call.1} parent=1 // pred_fallthru
      _
    // Predicated region
    $region22: #{tpu_custom_call.1} parent=1 // pred_check
      _
    $region23: #{tpu_custom_call.1} parent=1 // pred_check_branch
      %44 = sbr.rel (0) target = $region25
    $region24: #{tpu_custom_call.1} parent=1 // pred_region
      %45 = dma.done [#allocation7], 256
    $region25: #{tpu_custom_call.1} parent=1 // pred_fallthru
      _
    %v47 = vld [vmem:[#allocation3] sm:$0xf]
    %v48 = vld [vmem:[#allocation3 + $0x4] sm:$0xf]
    %v49 = vld [vmem:[#allocation3 + $0x8] sm:$0xf]
    %v50 = vld [vmem:[#allocation3 + $0xc] sm:$0xf]
    %v51 = vld [vmem:[#allocation3 + $0x10] sm:$0xf]
    %v52 = vld [vmem:[#allocation3 + $0x14] sm:$0xf]
    %v53 = vld [vmem:[#allocation3 + $0x18] sm:$0xf]
    %v54 = vld [vmem:[#allocation3 + $0x1c] sm:$0xf]
    %v55 = vld [vmem:[#allocation3 + $0x20] sm:$0xf]
    %v56 = vld [vmem:[#allocation3 + $0x24] sm:$0xf]
    %v57 = vld [vmem:[#allocation3 + $0x28] sm:$0xf]
    %v58 = vld [vmem:[#allocation3 + $0x2c] sm:$0xf]
    %v59 = vld [vmem:[#allocation3 + $0x30] sm:$0xf]
    %v60 = vld [vmem:[#allocation3 + $0x34] sm:$0xf]
    %v61 = vld [vmem:[#allocation3 + $0x38] sm:$0xf]
    %v62 = vld [vmem:[#allocation3 + $0x3c] sm:$0xf]
    %v63 = vld [vmem:[#allocation3 + $0x40] sm:$0xf]
    %v64 = vld [vmem:[#allocation3 + $0x44] sm:$0xf]
    %v65 = vld [vmem:[#allocation3 + $0x48] sm:$0xf]
    %v66 = vld [vmem:[#allocation3 + $0x4c] sm:$0xf]
    %v67 = vld [vmem:[#allocation3 + $0x50] sm:$0xf]
    %v68 = vld [vmem:[#allocation3 + $0x54] sm:$0xf]
    %v69 = vld [vmem:[#allocation3 + $0x58] sm:$0xf]
    %v70 = vld [vmem:[#allocation3 + $0x5c] sm:$0xf]
    %v71 = vld [vmem:[#allocation3 + $0x60] sm:$0xf]
    %v72 = vld [vmem:[#allocation3 + $0x64] sm:$0xf]
    %v73 = vld [vmem:[#allocation3 + $0x68] sm:$0xf]
    %v74 = vld [vmem:[#allocation3 + $0x6c] sm:$0xf]
    %v75 = vld [vmem:[#allocation3 + $0x70] sm:$0xf]
    %v76 = vld [vmem:[#allocation3 + $0x74] sm:$0xf]
    %v77 = vld [vmem:[#allocation3 + $0x78] sm:$0xf]
    %v78 = vld [vmem:[#allocation3 + $0x7c] sm:$0xf]
    %v79 = vld [vmem:[#allocation3 + $0x80] sm:$0xf]
    %v80 = vld [vmem:[#allocation3 + $0x84] sm:$0xf]
    %v81 = vld [vmem:[#allocation3 + $0x88] sm:$0xf]
    %v82 = vld [vmem:[#allocation3 + $0x8c] sm:$0xf]
    %v83 = vld [vmem:[#allocation3 + $0x90] sm:$0xf]
    %v84 = vld [vmem:[#allocation3 + $0x94] sm:$0xf]
    %v85 = vld [vmem:[#allocation3 + $0x98] sm:$0xf]
    %v86 = vld [vmem:[#allocation3 + $0x9c] sm:$0xf]
    %v87 = vld [vmem:[#allocation3 + $0xa0] sm:$0xf]
    %v88 = vld [vmem:[#allocation3 + $0xa4] sm:$0xf]
    %v89 = vld [vmem:[#allocation3 + $0xa8] sm:$0xf]
    %v90 = vld [vmem:[#allocation3 + $0xac] sm:$0xf]
    %v91 = vld [vmem:[#allocation3 + $0xb0] sm:$0xf]
    %v92 = vld [vmem:[#allocation3 + $0xb4] sm:$0xf]
    %v93 = vld [vmem:[#allocation3 + $0xb8] sm:$0xf]
    %v94 = vld [vmem:[#allocation3 + $0xbc] sm:$0xf]
    %v95 = vld [vmem:[#allocation3 + $0xc0] sm:$0xf]
    %v96 = vld [vmem:[#allocation3 + $0xc4] sm:$0xf]
    %v97 = vld [vmem:[#allocation3 + $0xc8] sm:$0xf]
    %v98 = vld [vmem:[#allocation3 + $0xcc] sm:$0xf]
    %v99 = vld [vmem:[#allocation3 + $0xd0] sm:$0xf]
    %v100 = vld [vmem:[#allocation3 + $0xd4] sm:$0xf]
    %v101 = vld [vmem:[#allocation3 + $0xd8] sm:$0xf]
    %v102 = vld [vmem:[#allocation3 + $0xdc] sm:$0xf]
    %v103 = vld [vmem:[#allocation3 + $0xe0] sm:$0xf]
    %v104 = vld [vmem:[#allocation3 + $0xe4] sm:$0xf]
    %v105 = vld [vmem:[#allocation3 + $0xe8] sm:$0xf]
    %v106 = vld [vmem:[#allocation3 + $0xec] sm:$0xf]
    %v107 = vld [vmem:[#allocation3 + $0xf0] sm:$0xf]
    %v108 = vld [vmem:[#allocation3 + $0xf4] sm:$0xf]
    %v109 = vld [vmem:[#allocation3 + $0xf8] sm:$0xf]
    %v110 = vld [vmem:[#allocation3 + $0xfc] sm:$0xf]
    %v111 = vld [vmem:[#allocation6] sm:$0xf]
    %v112 = vld [vmem:[#allocation6 + $0x4] sm:$0xf]
    %v113 = vld [vmem:[#allocation6 + $0x8] sm:$0xf]
    %v114 = vld [vmem:[#allocation6 + $0xc] sm:$0x3]
    %v179 = vunpack.c.l.b16 %v47
    %v180 = vunpack.c.l.b16 %v48
    %v181 = vunpack.c.l.b16 %v49
    %v182 = vunpack.c.l.b16 %v50
    %v183 = vunpack.c.l.b16 %v51
    %v184 = vunpack.c.l.b16 %v52
    %v185 = vunpack.c.l.b16 %v53
    %v186 = vunpack.c.l.b16 %v54
    %v187 = vunpack.c.l.b16 %v55
    %v188 = vunpack.c.l.b16 %v56
    %v189 = vunpack.c.l.b16 %v57
    %v190 = vunpack.c.l.b16 %v58
    %v191 = vunpack.c.l.b16 %v59
    %v192 = vunpack.c.l.b16 %v60
    %v193 = vunpack.c.l.b16 %v61
    %v194 = vunpack.c.l.b16 %v62
    %v195 = vunpack.c.l.b16 %v63
    %v196 = vunpack.c.l.b16 %v64
    %v197 = vunpack.c.l.b16 %v65
    %v198 = vunpack.c.l.b16 %v66
    %v199 = vunpack.c.l.b16 %v67
    %v200 = vunpack.c.l.b16 %v68
    %v201 = vunpack.c.l.b16 %v69
    %v202 = vunpack.c.l.b16 %v70
    %v203 = vunpack.c.l.b16 %v71
    %v204 = vunpack.c.l.b16 %v72
    %v205 = vunpack.c.l.b16 %v73
    %v206 = vunpack.c.l.b16 %v74
    %v207 = vunpack.c.l.b16 %v75
    %v208 = vunpack.c.l.b16 %v76
    %v209 = vunpack.c.l.b16 %v77
    %v210 = vunpack.c.l.b16 %v78
    %v211 = vunpack.c.l.b16 %v79
    %v212 = vunpack.c.l.b16 %v80
    %v213 = vunpack.c.l.b16 %v81
    %v214 = vunpack.c.l.b16 %v82
    %v215 = vunpack.c.l.b16 %v83
    %v216 = vunpack.c.l.b16 %v84
    %v217 = vunpack.c.l.b16 %v85
    %v218 = vunpack.c.l.b16 %v86
    %v219 = vunpack.c.l.b16 %v87
    %v220 = vunpack.c.l.b16 %v88
    %v221 = vunpack.c.l.b16 %v89
    %v222 = vunpack.c.l.b16 %v90
    %v223 = vunpack.c.l.b16 %v91
    %v224 = vunpack.c.l.b16 %v92
    %v225 = vunpack.c.l.b16 %v93
    %v226 = vunpack.c.l.b16 %v94
    %v227 = vunpack.c.l.b16 %v95
    %v228 = vunpack.c.l.b16 %v96
    %v229 = vunpack.c.l.b16 %v97
    %v230 = vunpack.c.l.b16 %v98
    %v231 = vunpack.c.l.b16 %v99
    %v232 = vunpack.c.l.b16 %v100
    %v233 = vunpack.c.l.b16 %v101
    %v234 = vunpack.c.l.b16 %v102
    %v235 = vunpack.c.l.b16 %v103
    %v236 = vunpack.c.l.b16 %v104
    %v237 = vunpack.c.l.b16 %v105
    %v238 = vunpack.c.l.b16 %v106
    %v239 = vunpack.c.l.b16 %v107
    %v240 = vunpack.c.l.b16 %v108
    %v241 = vunpack.c.l.b16 %v109
    %v242 = vunpack.c.l.b16 %v110
    %v243 = vpack.c.b16 %v180, %v179
    %v244 = vpack.c.b16 %v182, %v181
    %v245 = vpack.c.b16 %v184, %v183
    %v246 = vpack.c.b16 %v186, %v185
    %v247 = vpack.c.b16 %v188, %v187
    %v248 = vpack.c.b16 %v190, %v189
    %v249 = vpack.c.b16 %v192, %v191
    %v250 = vpack.c.b16 %v194, %v193
    %v251 = vpack.c.b16 %v196, %v195
    %v252 = vpack.c.b16 %v198, %v197
    %v253 = vpack.c.b16 %v200, %v199
    %v254 = vpack.c.b16 %v202, %v201
    %v255 = vpack.c.b16 %v204, %v203
    %v256 = vpack.c.b16 %v206, %v205
    %v257 = vpack.c.b16 %v208, %v207
    %v258 = vpack.c.b16 %v210, %v209
    %v259 = vpack.c.b16 %v212, %v211
    %v260 = vpack.c.b16 %v214, %v213
    %v261 = vpack.c.b16 %v216, %v215
    %v262 = vpack.c.b16 %v218, %v217
    %v263 = vpack.c.b16 %v220, %v219
    %v264 = vpack.c.b16 %v222, %v221
    %v265 = vpack.c.b16 %v224, %v223
    %v266 = vpack.c.b16 %v226, %v225
    %v267 = vpack.c.b16 %v228, %v227
    %v268 = vpack.c.b16 %v230, %v229
    %v269 = vpack.c.b16 %v232, %v231
    %v270 = vpack.c.b16 %v234, %v233
    %v271 = vpack.c.b16 %v236, %v235
    %v272 = vpack.c.b16 %v238, %v237
    %v273 = vpack.c.b16 %v240, %v239
    %v274 = vpack.c.b16 %v242, %v241
    %v279 = vunpack.c.l.b16 %v111
    %v280 = vunpack.c.l.b16 %v112
    %v281 = vunpack.c.l.b16 %v113
    %v282 = vunpack.c.l.b16 %v114
    %v283 = vpack.c.b16 %v280, %v279
    %v284 = vpack.c.b16 %v282, %v281
    %vm286 = vcmask 220160
    %v288 = vsel %vm286, %v243, 0
    %v291 = vsel %vm286, %v244, 0
    %v294 = vsel %vm286, %v245, 0
    %v297 = vsel %vm286, %v246, 0
    %v300 = vsel %vm286, %v247, 0
    %v303 = vsel %vm286, %v248, 0
    %v306 = vsel %vm286, %v249, 0
    %v309 = vsel %vm286, %v250, 0
    %v312 = vsel %vm286, %v251, 0
    %v315 = vsel %vm286, %v252, 0
    %v318 = vsel %vm286, %v253, 0
    %v321 = vsel %vm286, %v254, 0
    %v324 = vsel %vm286, %v255, 0
    %v327 = vsel %vm286, %v256, 0
    %v330 = vsel %vm286, %v257, 0
    %v333 = vsel %vm286, %v258, 0
    %v336 = vsel %vm286, %v259, 0
    %v339 = vsel %vm286, %v260, 0
    %v342 = vsel %vm286, %v261, 0
    %v345 = vsel %vm286, %v262, 0
    %v348 = vsel %vm286, %v263, 0
    %v351 = vsel %vm286, %v264, 0
    %v354 = vsel %vm286, %v265, 0
    %v357 = vsel %vm286, %v266, 0
    %v360 = vsel %vm286, %v267, 0
    %v363 = vsel %vm286, %v268, 0
    %v366 = vsel %vm286, %v269, 0
    %v369 = vsel %vm286, %v270, 0
    %v372 = vsel %vm286, %v271, 0
    %v375 = vsel %vm286, %v272, 0
    %v378 = vsel %vm286, %v273, 0
    %v381 = vsel %vm286, %v274, 0
    %vm383 = vcmask 1044480
    %vm384 = vcmask 1045504
    %v385 = vsel %vm383, 4294967295, 65535
    %v386 = vsel %vm384, %v385, 0
    %v388 = vand.u32 %v284, %v386
    %390 = vmatprep.subr.bf16.mxu0 0
    %391 = vmatpush1.bf16.msra.mxu0 0
    %392 = vmatprep.subr.bf16.mxu0 0
    %393 = vmatpush1.bf16.msra.mxu0 0
    %394 = vmatprep.subr.bf16.mxu0 0
    %395 = vmatpush1.bf16.msra.mxu0 0
    %396 = vmatprep.subr.bf16.mxu0 0
    %397 = vmatpush1.bf16.msra.mxu0 0
    %398 = vmatprep.subr.bf16.mxu0 0
    %399 = vmatpush1.bf16.msra.mxu0 0
    %400 = vmatprep.subr.bf16.mxu0 0
    %401 = vmatpush1.bf16.msra.mxu0 0
    %402 = vmatprep.subr.bf16.mxu0 0
    %403 = vmatpush1.bf16.msra.mxu0 %v388
    %404 = vmatprep.subr.bf16.mxu0 0
    %405 = vmatpush1.bf16.msra.mxu0 %v283
    %406 = vmatprep.subr.bf16.mxu0 0
    %407 = vmatpush2.bf16.msra.mxu0 0
    %408 = vmatprep.subr.bf16.mxu0 0
    %409 = vmatpush2.bf16.msra.mxu0 0
    %410 = vmatprep.subr.bf16.mxu0 0
    %411 = vmatpush2.bf16.msra.mxu0 0
    %412 = vmatprep.subr.bf16.mxu0 0
    %413 = vmatpush2.bf16.msra.mxu0 0
    %414 = vmatprep.subr.bf16.mxu0 0
    %415 = vmatpush2.bf16.msra.mxu0 0
    %416 = vmatprep.subr.bf16.mxu0 0
    %417 = vmatpush2.bf16.msra.mxu0 0
    %418 = vmatprep.subr.bf16.mxu0 0
    %419 = vmatpush2.bf16.msra.mxu0 0
    %420 = vmatprep.subr.bf16.mxu0 0
    %421 = vmatpush2.bf16.msra.mxu0 0
    %422 = vmatprep.mubr.bf16.mxu0 0
    %423 = vmatmul.mubr.bf16.gmra.mxu0 %v288
    %v424 = vpop.f32.mrf.mxu0
    %v425 = vadd.f32 0.0, %v424
    %v426 = vpop.f32.mrf.mxu0
    %v427 = vpop.f32.mrf.mxu0
    %v428 = vadd.f32 0.0, %v427
    %v429 = vpop.f32.mrf.mxu0
    %430 = vmatprep.mubr.bf16.mxu0 0
    %431 = vmatmul.mubr.bf16.gmra.mxu0 %v291
    %v432 = vpop.f32.mrf.mxu0
    %v433 = vadd.f32 0.0, %v432
    %v434 = vpop.f32.mrf.mxu0
    %v435 = vpop.f32.mrf.mxu0
    %v436 = vadd.f32 0.0, %v435
    %v437 = vpop.f32.mrf.mxu0
    %438 = vmatprep.mubr.bf16.mxu0 0
    %439 = vmatmul.mubr.bf16.gmra.mxu0 %v294
    %v440 = vpop.f32.mrf.mxu0
    %v441 = vadd.f32 0.0, %v440
    %v442 = vpop.f32.mrf.mxu0
    %v443 = vpop.f32.mrf.mxu0
    %v444 = vadd.f32 0.0, %v443
    %v445 = vpop.f32.mrf.mxu0
    %446 = vmatprep.mubr.bf16.mxu0 0
    %447 = vmatmul.mubr.bf16.gmra.mxu0 %v297
    %v448 = vpop.f32.mrf.mxu0
    %v449 = vadd.f32 0.0, %v448
    %v450 = vpop.f32.mrf.mxu0
    %v451 = vpop.f32.mrf.mxu0
    %v452 = vadd.f32 0.0, %v451
    %v453 = vpop.f32.mrf.mxu0
    %454 = vmatprep.mubr.bf16.mxu0 0
    %455 = vmatmul.mubr.bf16.gmra.mxu0 %v300
    %v456 = vpop.f32.mrf.mxu0
    %v457 = vadd.f32 0.0, %v456
    %v458 = vpop.f32.mrf.mxu0
    %v459 = vpop.f32.mrf.mxu0
    %v460 = vadd.f32 0.0, %v459
    %v461 = vpop.f32.mrf.mxu0
    %462 = vmatprep.mubr.bf16.mxu0 0
    %463 = vmatmul.mubr.bf16.gmra.mxu0 %v303
    %v464 = vpop.f32.mrf.mxu0
    %v465 = vadd.f32 0.0, %v464
    %v466 = vpop.f32.mrf.mxu0
    %v467 = vpop.f32.mrf.mxu0
    %v468 = vadd.f32 0.0, %v467
    %v469 = vpop.f32.mrf.mxu0
    %470 = vmatprep.mubr.bf16.mxu0 0
    %471 = vmatmul.mubr.bf16.gmra.mxu0 %v306
    %v472 = vpop.f32.mrf.mxu0
    %v473 = vadd.f32 0.0, %v472
    %v474 = vpop.f32.mrf.mxu0
    %v475 = vpop.f32.mrf.mxu0
    %v476 = vadd.f32 0.0, %v475
    %v477 = vpop.f32.mrf.mxu0
    %478 = vmatprep.mubr.bf16.mxu0 0
    %479 = vmatmul.mubr.bf16.gmra.mxu0 %v309
    %v480 = vpop.f32.mrf.mxu0
    %v481 = vadd.f32 0.0, %v480
    %v482 = vpop.f32.mrf.mxu0
    %v483 = vpop.f32.mrf.mxu0
    %v484 = vadd.f32 0.0, %v483
    %v485 = vpop.f32.mrf.mxu0
    %486 = vmatprep.mubr.bf16.mxu0 0
    %487 = vmatmul.mubr.bf16.gmra.mxu0 %v312
    %v488 = vpop.f32.mrf.mxu0
    %v489 = vadd.f32 0.0, %v488
    %v490 = vpop.f32.mrf.mxu0
    %v491 = vpop.f32.mrf.mxu0
    %v492 = vadd.f32 0.0, %v491
    %v493 = vpop.f32.mrf.mxu0
    %494 = vmatprep.mubr.bf16.mxu0 0
    %495 = vmatmul.mubr.bf16.gmra.mxu0 %v315
    %v496 = vpop.f32.mrf.mxu0
    %v497 = vadd.f32 0.0, %v496
    %v498 = vpop.f32.mrf.mxu0
    %v499 = vpop.f32.mrf.mxu0
    %v500 = vadd.f32 0.0, %v499
    %v501 = vpop.f32.mrf.mxu0
    %502 = vmatprep.mubr.bf16.mxu0 0
    %503 = vmatmul.mubr.bf16.gmra.mxu0 %v318
    %v504 = vpop.f32.mrf.mxu0
    %v505 = vadd.f32 0.0, %v504
    %v506 = vpop.f32.mrf.mxu0
    %v507 = vpop.f32.mrf.mxu0
    %v508 = vadd.f32 0.0, %v507
    %v509 = vpop.f32.mrf.mxu0
    %510 = vmatprep.mubr.bf16.mxu0 0
    %511 = vmatmul.mubr.bf16.gmra.mxu0 %v321
    %v512 = vpop.f32.mrf.mxu0
    %v513 = vadd.f32 0.0, %v512
    %v514 = vpop.f32.mrf.mxu0
    %v515 = vpop.f32.mrf.mxu0
    %v516 = vadd.f32 0.0, %v515
    %v517 = vpop.f32.mrf.mxu0
    %518 = vmatprep.mubr.bf16.mxu0 0
    %519 = vmatmul.mubr.bf16.gmra.mxu0 %v324
    %v520 = vpop.f32.mrf.mxu0
    %v521 = vadd.f32 0.0, %v520
    %v522 = vpop.f32.mrf.mxu0
    %v523 = vpop.f32.mrf.mxu0
    %v524 = vadd.f32 0.0, %v523
    %v525 = vpop.f32.mrf.mxu0
    %526 = vmatprep.mubr.bf16.mxu0 0
    %527 = vmatmul.mubr.bf16.gmra.mxu0 %v327
    %v528 = vpop.f32.mrf.mxu0
    %v529 = vadd.f32 0.0, %v528
    %v530 = vpop.f32.mrf.mxu0
    %v531 = vpop.f32.mrf.mxu0
    %v532 = vadd.f32 0.0, %v531
    %v533 = vpop.f32.mrf.mxu0
    %534 = vmatprep.mubr.bf16.mxu0 0
    %535 = vmatmul.mubr.bf16.gmra.mxu0 %v330
    %v536 = vpop.f32.mrf.mxu0
    %v537 = vadd.f32 0.0, %v536
    %v538 = vpop.f32.mrf.mxu0
    %v539 = vpop.f32.mrf.mxu0
    %v540 = vadd.f32 0.0, %v539
    %v541 = vpop.f32.mrf.mxu0
    %542 = vmatprep.mubr.bf16.mxu0 0
    %543 = vmatmul.mubr.bf16.gmra.mxu0 %v333
    %v544 = vpop.f32.mrf.mxu0
    %v545 = vadd.f32 0.0, %v544
    %v546 = vpop.f32.mrf.mxu0
    %v547 = vpop.f32.mrf.mxu0
    %v548 = vadd.f32 0.0, %v547
    %v549 = vpop.f32.mrf.mxu0
    %550 = vmatprep.mubr.bf16.mxu0 0
    %551 = vmatmul.mubr.bf16.gmra.mxu0 %v336
    %v552 = vpop.f32.mrf.mxu0
    %v553 = vadd.f32 0.0, %v552
    %v554 = vpop.f32.mrf.mxu0
    %v555 = vpop.f32.mrf.mxu0
    %v556 = vadd.f32 0.0, %v555
    %v557 = vpop.f32.mrf.mxu0
    %558 = vmatprep.mubr.bf16.mxu0 0
    %559 = vmatmul.mubr.bf16.gmra.mxu0 %v339
    %v560 = vpop.f32.mrf.mxu0
    %v561 = vadd.f32 0.0, %v560
    %v562 = vpop.f32.mrf.mxu0
    %v563 = vpop.f32.mrf.mxu0
    %v564 = vadd.f32 0.0, %v563
    %v565 = vpop.f32.mrf.mxu0
    %566 = vmatprep.mubr.bf16.mxu0 0
    %567 = vmatmul.mubr.bf16.gmra.mxu0 %v342
    %v568 = vpop.f32.mrf.mxu0
    %v569 = vadd.f32 0.0, %v568
    %v570 = vpop.f32.mrf.mxu0
    %v571 = vpop.f32.mrf.mxu0
    %v572 = vadd.f32 0.0, %v571
    %v573 = vpop.f32.mrf.mxu0
    %574 = vmatprep.mubr.bf16.mxu0 0
    %575 = vmatmul.mubr.bf16.gmra.mxu0 %v345
    %v576 = vpop.f32.mrf.mxu0
    %v577 = vadd.f32 0.0, %v576
    %v578 = vpop.f32.mrf.mxu0
    %v579 = vpop.f32.mrf.mxu0
    %v580 = vadd.f32 0.0, %v579
    %v581 = vpop.f32.mrf.mxu0
    %582 = vmatprep.mubr.bf16.mxu0 0
    %583 = vmatmul.mubr.bf16.gmra.mxu0 %v348
    %v584 = vpop.f32.mrf.mxu0
    %v585 = vadd.f32 0.0, %v584
    %v586 = vpop.f32.mrf.mxu0
    %v587 = vpop.f32.mrf.mxu0
    %v588 = vadd.f32 0.0, %v587
    %v589 = vpop.f32.mrf.mxu0
    %590 = vmatprep.mubr.bf16.mxu0 0
    %591 = vmatmul.mubr.bf16.gmra.mxu0 %v351
    %v592 = vpop.f32.mrf.mxu0
    %v593 = vadd.f32 0.0, %v592
    %v594 = vpop.f32.mrf.mxu0
    %v595 = vpop.f32.mrf.mxu0
    %v596 = vadd.f32 0.0, %v595
    %v597 = vpop.f32.mrf.mxu0
    %598 = vmatprep.mubr.bf16.mxu0 0
    %599 = vmatmul.mubr.bf16.gmra.mxu0 %v354
    %v600 = vpop.f32.mrf.mxu0
    %v601 = vadd.f32 0.0, %v600
    %v602 = vpop.f32.mrf.mxu0
    %v603 = vpop.f32.mrf.mxu0
    %v604 = vadd.f32 0.0, %v603
    %v605 = vpop.f32.mrf.mxu0
    %606 = vmatprep.mubr.bf16.mxu0 0
    %607 = vmatmul.mubr.bf16.gmra.mxu0 %v357
    %v608 = vpop.f32.mrf.mxu0
    %v609 = vadd.f32 0.0, %v608
    %v610 = vpop.f32.mrf.mxu0
    %v611 = vpop.f32.mrf.mxu0
    %v612 = vadd.f32 0.0, %v611
    %v613 = vpop.f32.mrf.mxu0
    %614 = vmatprep.mubr.bf16.mxu0 0
    %615 = vmatmul.mubr.bf16.gmra.mxu0 %v360
    %v616 = vpop.f32.mrf.mxu0
    %v617 = vadd.f32 0.0, %v616
    %v618 = vpop.f32.mrf.mxu0
    %v619 = vpop.f32.mrf.mxu0
    %v620 = vadd.f32 0.0, %v619
    %v621 = vpop.f32.mrf.mxu0
    %622 = vmatprep.mubr.bf16.mxu0 0
    %623 = vmatmul.mubr.bf16.gmra.mxu0 %v363
    %v624 = vpop.f32.mrf.mxu0
    %v625 = vadd.f32 0.0, %v624
    %v626 = vpop.f32.mrf.mxu0
    %v627 = vpop.f32.mrf.mxu0
    %v628 = vadd.f32 0.0, %v627
    %v629 = vpop.f32.mrf.mxu0
    %630 = vmatprep.mubr.bf16.mxu0 0
    %631 = vmatmul.mubr.bf16.gmra.mxu0 %v366
    %v632 = vpop.f32.mrf.mxu0
    %v633 = vadd.f32 0.0, %v632
    %v634 = vpop.f32.mrf.mxu0
    %v635 = vpop.f32.mrf.mxu0
    %v636 = vadd.f32 0.0, %v635
    %v637 = vpop.f32.mrf.mxu0
    %638 = vmatprep.mubr.bf16.mxu0 0
    %639 = vmatmul.mubr.bf16.gmra.mxu0 %v369
    %v640 = vpop.f32.mrf.mxu0
    %v641 = vadd.f32 0.0, %v640
    %v642 = vpop.f32.mrf.mxu0
    %v643 = vpop.f32.mrf.mxu0
    %v644 = vadd.f32 0.0, %v643
    %v645 = vpop.f32.mrf.mxu0
    %646 = vmatprep.mubr.bf16.mxu0 0
    %647 = vmatmul.mubr.bf16.gmra.mxu0 %v372
    %v648 = vpop.f32.mrf.mxu0
    %v649 = vadd.f32 0.0, %v648
    %v650 = vpop.f32.mrf.mxu0
    %v651 = vpop.f32.mrf.mxu0
    %v652 = vadd.f32 0.0, %v651
    %v653 = vpop.f32.mrf.mxu0
    %654 = vmatprep.mubr.bf16.mxu0 0
    %655 = vmatmul.mubr.bf16.gmra.mxu0 %v375
    %v656 = vpop.f32.mrf.mxu0
    %v657 = vadd.f32 0.0, %v656
    %v658 = vpop.f32.mrf.mxu0
    %v659 = vpop.f32.mrf.mxu0
    %v660 = vadd.f32 0.0, %v659
    %v661 = vpop.f32.mrf.mxu0
    %662 = vmatprep.mubr.bf16.mxu0 0
    %663 = vmatmul.mubr.bf16.gmra.mxu0 %v378
    %v664 = vpop.f32.mrf.mxu0
    %v665 = vadd.f32 0.0, %v664
    %v666 = vpop.f32.mrf.mxu0
    %v667 = vpop.f32.mrf.mxu0
    %v668 = vadd.f32 0.0, %v667
    %v669 = vpop.f32.mrf.mxu0
    %670 = vmatprep.mubr.bf16.mxu0 0
    %671 = vmatmul.mubr.bf16.gmra.mxu0 %v381
    %v672 = vpop.f32.mrf.mxu0
    %v673 = vadd.f32 0.0, %v672
    %v674 = vpop.f32.mrf.mxu0
    %v675 = vpop.f32.mrf.mxu0
    %v676 = vadd.f32 0.0, %v675
    %v677 = vpop.f32.mrf.mxu0
    %678 = vdwg.mxu0
    %vm679 = vcmask 523264
    %680 = vst.msk [vmem:[#allocation2] sm:$0xff] %vm679, %v425
    %681 = vst.msk [vmem:[#allocation2 + $0x8] sm:$0xff] %vm679, %v428
    %682 = vst.msk [vmem:[#allocation2 + $0x10] sm:$0xff] %vm679, %v433
    %683 = vst.msk [vmem:[#allocation2 + $0x18] sm:$0xff] %vm679, %v436
    %684 = vst.msk [vmem:[#allocation2 + $0x20] sm:$0xff] %vm679, %v441
    %685 = vst.msk [vmem:[#allocation2 + $0x28] sm:$0xff] %vm679, %v444
    %686 = vst.msk [vmem:[#allocation2 + $0x30] sm:$0xff] %vm679, %v449
    %687 = vst.msk [vmem:[#allocation2 + $0x38] sm:$0xff] %vm679, %v452
    %688 = vst.msk [vmem:[#allocation2 + $0x40] sm:$0xff] %vm679, %v457
    %689 = vst.msk [vmem:[#allocation2 + $0x48] sm:$0xff] %vm679, %v460
    %690 = vst.msk [vmem:[#allocation2 + $0x50] sm:$0xff] %vm679, %v465
    %691 = vst.msk [vmem:[#allocation2 + $0x58] sm:$0xff] %vm679, %v468
    %692 = vst.msk [vmem:[#allocation2 + $0x60] sm:$0xff] %vm679, %v473
    %693 = vst.msk [vmem:[#allocation2 + $0x68] sm:$0xff] %vm679, %v476
    %694 = vst.msk [vmem:[#allocation2 + $0x70] sm:$0xff] %vm679, %v481
    %695 = vst.msk [vmem:[#allocation2 + $0x78] sm:$0xff] %vm679, %v484
    %696 = vst.msk [vmem:[#allocation2 + $0x80] sm:$0xff] %vm679, %v489
    %697 = vst.msk [vmem:[#allocation2 + $0x88] sm:$0xff] %vm679, %v492
    %698 = vst.msk [vmem:[#allocation2 + $0x90] sm:$0xff] %vm679, %v497
    %699 = vst.msk [vmem:[#allocation2 + $0x98] sm:$0xff] %vm679, %v500
    %700 = vst.msk [vmem:[#allocation2 + $0xa0] sm:$0xff] %vm679, %v505
    %701 = vst.msk [vmem:[#allocation2 + $0xa8] sm:$0xff] %vm679, %v508
    %702 = vst.msk [vmem:[#allocation2 + $0xb0] sm:$0xff] %vm679, %v513
    %703 = vst.msk [vmem:[#allocation2 + $0xb8] sm:$0xff] %vm679, %v516
    %704 = vst.msk [vmem:[#allocation2 + $0xc0] sm:$0xff] %vm679, %v521
    %705 = vst.msk [vmem:[#allocation2 + $0xc8] sm:$0xff] %vm679, %v524
    %706 = vst.msk [vmem:[#allocation2 + $0xd0] sm:$0xff] %vm679, %v529
    %707 = vst.msk [vmem:[#allocation2 + $0xd8] sm:$0xff] %vm679, %v532
    %708 = vst.msk [vmem:[#allocation2 + $0xe0] sm:$0xff] %vm679, %v537
    %709 = vst.msk [vmem:[#allocation2 + $0xe8] sm:$0xff] %vm679, %v540
    %710 = vst.msk [vmem:[#allocation2 + $0xf0] sm:$0xff] %vm679, %v545
    %711 = vst.msk [vmem:[#allocation2 + $0xf8] sm:$0xff] %vm679, %v548
    %712 = vst.msk [vmem:[#allocation2 + $0x100] sm:$0xff] %vm679, %v553
    %713 = vst.msk [vmem:[#allocation2 + $0x108] sm:$0xff] %vm679, %v556
    %714 = vst.msk [vmem:[#allocation2 + $0x110] sm:$0xff] %vm679, %v561
    %715 = vst.msk [vmem:[#allocation2 + $0x118] sm:$0xff] %vm679, %v564
    %716 = vst.msk [vmem:[#allocation2 + $0x120] sm:$0xff] %vm679, %v569
    %717 = vst.msk [vmem:[#allocation2 + $0x128] sm:$0xff] %vm679, %v572
    %718 = vst.msk [vmem:[#allocation2 + $0x130] sm:$0xff] %vm679, %v577
    %719 = vst.msk [vmem:[#allocation2 + $0x138] sm:$0xff] %vm679, %v580
    %720 = vst.msk [vmem:[#allocation2 + $0x140] sm:$0xff] %vm679, %v585
    %721 = vst.msk [vmem:[#allocation2 + $0x148] sm:$0xff] %vm679, %v588
    %722 = vst.msk [vmem:[#allocation2 + $0x150] sm:$0xff] %vm679, %v593
    %723 = vst.msk [vmem:[#allocation2 + $0x158] sm:$0xff] %vm679, %v596
    %724 = vst.msk [vmem:[#allocation2 + $0x160] sm:$0xff] %vm679, %v601
    %725 = vst.msk [vmem:[#allocation2 + $0x168] sm:$0xff] %vm679, %v604
    %726 = vst.msk [vmem:[#allocation2 + $0x170] sm:$0xff] %vm679, %v609
    %727 = vst.msk [vmem:[#allocation2 + $0x178] sm:$0xff] %vm679, %v612
    %728 = vst.msk [vmem:[#allocation2 + $0x180] sm:$0xff] %vm679, %v617
    %729 = vst.msk [vmem:[#allocation2 + $0x188] sm:$0xff] %vm679, %v620
    %730 = vst.msk [vmem:[#allocation2 + $0x190] sm:$0xff] %vm679, %v625
    %731 = vst.msk [vmem:[#allocation2 + $0x198] sm:$0xff] %vm679, %v628
    %732 = vst.msk [vmem:[#allocation2 + $0x1a0] sm:$0xff] %vm679, %v633
    %733 = vst.msk [vmem:[#allocation2 + $0x1a8] sm:$0xff] %vm679, %v636
    %734 = vst.msk [vmem:[#allocation2 + $0x1b0] sm:$0xff] %vm679, %v641
    %735 = vst.msk [vmem:[#allocation2 + $0x1b8] sm:$0xff] %vm679, %v644
    %736 = vst.msk [vmem:[#allocation2 + $0x1c0] sm:$0xff] %vm679, %v649
    %737 = vst.msk [vmem:[#allocation2 + $0x1c8] sm:$0xff] %vm679, %v652
    %738 = vst.msk [vmem:[#allocation2 + $0x1d0] sm:$0xff] %vm679, %v657
    %739 = vst.msk [vmem:[#allocation2 + $0x1d8] sm:$0xff] %vm679, %v660
    %740 = vst.msk [vmem:[#allocation2 + $0x1e0] sm:$0xff] %vm679, %v665
    %741 = vst.msk [vmem:[#allocation2 + $0x1e8] sm:$0xff] %vm679, %v668
    %742 = vst.msk [vmem:[#allocation2 + $0x1f0] sm:$0xff] %vm679, %v673
    %743 = vst.msk [vmem:[#allocation2 + $0x1f8] sm:$0xff] %vm679, %v676
    %v744 = vld [vmem:[#allocation2] sm:$0xff]
    %v745 = vld [vmem:[#allocation2 + $0x8] sm:$0xff]
    %v746 = vld [vmem:[#allocation2 + $0x10] sm:$0xff]
    %v747 = vld [vmem:[#allocation2 + $0x18] sm:$0xff]
    %v748 = vld [vmem:[#allocation2 + $0x20] sm:$0xff]
    %v749 = vld [vmem:[#allocation2 + $0x28] sm:$0xff]
    %v750 = vld [vmem:[#allocation2 + $0x30] sm:$0xff]
    %v751 = vld [vmem:[#allocation2 + $0x38] sm:$0xff]
    %v752 = vld [vmem:[#allocation2 + $0x40] sm:$0xff]
    %v753 = vld [vmem:[#allocation2 + $0x48] sm:$0xff]
    %v754 = vld [vmem:[#allocation2 + $0x50] sm:$0xff]
    %v755 = vld [vmem:[#allocation2 + $0x58] sm:$0xff]
    %v756 = vld [vmem:[#allocation2 + $0x60] sm:$0xff]
    %v757 = vld [vmem:[#allocation2 + $0x68] sm:$0xff]
    %v758 = vld [vmem:[#allocation2 + $0x70] sm:$0xff]
    %v759 = vld [vmem:[#allocation2 + $0x78] sm:$0xff]
    %v760 = vld [vmem:[#allocation2 + $0x80] sm:$0xff]
    %v761 = vld [vmem:[#allocation2 + $0x88] sm:$0xff]
    %v762 = vld [vmem:[#allocation2 + $0x90] sm:$0xff]
    %v763 = vld [vmem:[#allocation2 + $0x98] sm:$0xff]
    %v764 = vld [vmem:[#allocation2 + $0xa0] sm:$0xff]
    %v765 = vld [vmem:[#allocation2 + $0xa8] sm:$0xff]
    %v766 = vld [vmem:[#allocation2 + $0xb0] sm:$0xff]
    %v767 = vld [vmem:[#allocation2 + $0xb8] sm:$0xff]
    %v768 = vld [vmem:[#allocation2 + $0xc0] sm:$0xff]
    %v769 = vld [vmem:[#allocation2 + $0xc8] sm:$0xff]
    %v770 = vld [vmem:[#allocation2 + $0xd0] sm:$0xff]
    %v771 = vld [vmem:[#allocation2 + $0xd8] sm:$0xff]
    %v772 = vld [vmem:[#allocation2 + $0xe0] sm:$0xff]
    %v773 = vld [vmem:[#allocation2 + $0xe8] sm:$0xff]
    %v774 = vld [vmem:[#allocation2 + $0xf0] sm:$0xff]
    %v775 = vld [vmem:[#allocation2 + $0xf8] sm:$0xff]
    %v776 = vld [vmem:[#allocation2 + $0x100] sm:$0xff]
    %v777 = vld [vmem:[#allocation2 + $0x108] sm:$0xff]
    %v778 = vld [vmem:[#allocation2 + $0x110] sm:$0xff]
    %v779 = vld [vmem:[#allocation2 + $0x118] sm:$0xff]
    %v780 = vld [vmem:[#allocation2 + $0x120] sm:$0xff]
    %v781 = vld [vmem:[#allocation2 + $0x128] sm:$0xff]
    %v782 = vld [vmem:[#allocation2 + $0x130] sm:$0xff]
    %v783 = vld [vmem:[#allocation2 + $0x138] sm:$0xff]
    %v784 = vld [vmem:[#allocation2 + $0x140] sm:$0xff]
    %v785 = vld [vmem:[#allocation2 + $0x148] sm:$0xff]
    %v786 = vld [vmem:[#allocation2 + $0x150] sm:$0xff]
    %v787 = vld [vmem:[#allocation2 + $0x158] sm:$0xff]
    %v788 = vld [vmem:[#allocation2 + $0x160] sm:$0xff]
    %v789 = vld [vmem:[#allocation2 + $0x168] sm:$0xff]
    %v790 = vld [vmem:[#allocation2 + $0x170] sm:$0xff]
    %v791 = vld [vmem:[#allocation2 + $0x178] sm:$0xff]
    %v792 = vld [vmem:[#allocation2 + $0x180] sm:$0xff]
    %v793 = vld [vmem:[#allocation2 + $0x188] sm:$0xff]
    %v794 = vld [vmem:[#allocation2 + $0x190] sm:$0xff]
    %v795 = vld [vmem:[#allocation2 + $0x198] sm:$0xff]
    %v796 = vld [vmem:[#allocation2 + $0x1a0] sm:$0xff]
    %v797 = vld [vmem:[#allocation2 + $0x1a8] sm:$0xff]
    %v798 = vld [vmem:[#allocation2 + $0x1b0] sm:$0xff]
    %v799 = vld [vmem:[#allocation2 + $0x1b8] sm:$0xff]
    %v800 = vld [vmem:[#allocation2 + $0x1c0] sm:$0xff]
    %v801 = vld [vmem:[#allocation2 + $0x1c8] sm:$0xff]
    %v802 = vld [vmem:[#allocation2 + $0x1d0] sm:$0xff]
    %v803 = vld [vmem:[#allocation2 + $0x1d8] sm:$0xff]
    %v804 = vld [vmem:[#allocation2 + $0x1e0] sm:$0xff]
    %v805 = vld [vmem:[#allocation2 + $0x1e8] sm:$0xff]
    %v806 = vld [vmem:[#allocation2 + $0x1f0] sm:$0xff]
    %v807 = vld [vmem:[#allocation2 + $0x1f8] sm:$0xff]
    %v808 = vsel %vm679, %v744, 0.0
    %v809 = vsel %vm679, %v745, 0.0
    %v810 = vadd.f32 %v808, %v809
    %v811 = vsel %vm679, %v746, 0.0
    %v812 = vadd.f32 %v810, %v811
    %v813 = vsel %vm679, %v747, 0.0
    %v814 = vadd.f32 %v812, %v813
    %v815 = vsel %vm679, %v748, 0.0
    %v816 = vadd.f32 %v814, %v815
    %v817 = vsel %vm679, %v749, 0.0
    %v818 = vadd.f32 %v816, %v817
    %v819 = vsel %vm679, %v750, 0.0
    %v820 = vadd.f32 %v818, %v819
    %v821 = vsel %vm679, %v751, 0.0
    %v822 = vadd.f32 %v820, %v821
    %v823 = vsel %vm679, %v752, 0.0
    %v824 = vadd.f32 %v822, %v823
    %v825 = vsel %vm679, %v753, 0.0
    %v826 = vadd.f32 %v824, %v825
    %v827 = vsel %vm679, %v754, 0.0
    %v828 = vadd.f32 %v826, %v827
    %v829 = vsel %vm679, %v755, 0.0
    %v830 = vadd.f32 %v828, %v829
    %v831 = vsel %vm679, %v756, 0.0
    %v832 = vadd.f32 %v830, %v831
    %v833 = vsel %vm679, %v757, 0.0
    %v834 = vadd.f32 %v832, %v833
    %v835 = vsel %vm679, %v758, 0.0
    %v836 = vadd.f32 %v834, %v835
    %v837 = vsel %vm679, %v759, 0.0
    %v838 = vadd.f32 %v836, %v837
    %v839 = vsel %vm679, %v760, 0.0
    %v840 = vadd.f32 %v838, %v839
    %v841 = vsel %vm679, %v761, 0.0
    %v842 = vadd.f32 %v840, %v841
    %v843 = vsel %vm679, %v762, 0.0
    %v844 = vadd.f32 %v842, %v843
    %v845 = vsel %vm679, %v763, 0.0
    %v846 = vadd.f32 %v844, %v845
    %v847 = vsel %vm679, %v764, 0.0
    %v848 = vadd.f32 %v846, %v847
    %v849 = vsel %vm679, %v765, 0.0
    %v850 = vadd.f32 %v848, %v849
    %v851 = vsel %vm679, %v766, 0.0
    %v852 = vadd.f32 %v850, %v851
    %v853 = vsel %vm679, %v767, 0.0
    %v854 = vadd.f32 %v852, %v853
    %v855 = vsel %vm679, %v768, 0.0
    %v856 = vadd.f32 %v854, %v855
    %v857 = vsel %vm679, %v769, 0.0
    %v858 = vadd.f32 %v856, %v857
    %v859 = vsel %vm679, %v770, 0.0
    %v860 = vadd.f32 %v858, %v859
    %v861 = vsel %vm679, %v771, 0.0
    %v862 = vadd.f32 %v860, %v861
    %v863 = vsel %vm679, %v772, 0.0
    %v864 = vadd.f32 %v862, %v863
    %v865 = vsel %vm679, %v773, 0.0
    %v866 = vadd.f32 %v864, %v865
    %v867 = vsel %vm679, %v774, 0.0
    %v868 = vadd.f32 %v866, %v867
    %v869 = vsel %vm679, %v775, 0.0
    %v870 = vadd.f32 %v868, %v869
    %v871 = vsel %vm679, %v776, 0.0
    %v872 = vadd.f32 %v870, %v871
    %v873 = vsel %vm679, %v777, 0.0
    %v874 = vadd.f32 %v872, %v873
    %v875 = vsel %vm679, %v778, 0.0
    %v876 = vadd.f32 %v874, %v875
    %v877 = vsel %vm679, %v779, 0.0
    %v878 = vadd.f32 %v876, %v877
    %v879 = vsel %vm679, %v780, 0.0
    %v880 = vadd.f32 %v878, %v879
    %v881 = vsel %vm679, %v781, 0.0
    %v882 = vadd.f32 %v880, %v881
    %v883 = vsel %vm679, %v782, 0.0
    %v884 = vadd.f32 %v882, %v883
    %v885 = vsel %vm679, %v783, 0.0
    %v886 = vadd.f32 %v884, %v885
    %v887 = vsel %vm679, %v784, 0.0
    %v888 = vadd.f32 %v886, %v887
    %v889 = vsel %vm679, %v785, 0.0
    %v890 = vadd.f32 %v888, %v889
    %v891 = vsel %vm679, %v786, 0.0
    %v892 = vadd.f32 %v890, %v891
    %v893 = vsel %vm679, %v787, 0.0
    %v894 = vadd.f32 %v892, %v893
    %v895 = vsel %vm679, %v788, 0.0
    %v896 = vadd.f32 %v894, %v895
    %v897 = vsel %vm679, %v789, 0.0
    %v898 = vadd.f32 %v896, %v897
    %v899 = vsel %vm679, %v790, 0.0
    %v900 = vadd.f32 %v898, %v899
    %v901 = vsel %vm679, %v791, 0.0
    %v902 = vadd.f32 %v900, %v901
    %v903 = vsel %vm679, %v792, 0.0
    %v904 = vadd.f32 %v902, %v903
    %v905 = vsel %vm679, %v793, 0.0
    %v906 = vadd.f32 %v904, %v905
    %v907 = vsel %vm679, %v794, 0.0
    %v908 = vadd.f32 %v906, %v907
    %v909 = vsel %vm679, %v795, 0.0
    %v910 = vadd.f32 %v908, %v909
    %v911 = vsel %vm679, %v796, 0.0
    %v912 = vadd.f32 %v910, %v911
    %v913 = vsel %vm679, %v797, 0.0
    %v914 = vadd.f32 %v912, %v913
    %v915 = vsel %vm679, %v798, 0.0
    %v916 = vadd.f32 %v914, %v915
    %v917 = vsel %vm679, %v799, 0.0
    %v918 = vadd.f32 %v916, %v917
    %v919 = vsel %vm679, %v800, 0.0
    %v920 = vadd.f32 %v918, %v919
    %v921 = vsel %vm679, %v801, 0.0
    %v922 = vadd.f32 %v920, %v921
    %v923 = vsel %vm679, %v802, 0.0
    %v924 = vadd.f32 %v922, %v923
    %v925 = vsel %vm679, %v803, 0.0
    %v926 = vadd.f32 %v924, %v925
    %v927 = vsel %vm679, %v804, 0.0
    %v928 = vadd.f32 %v926, %v927
    %v929 = vsel %vm679, %v805, 0.0
    %v930 = vadd.f32 %v928, %v929
    %v931 = vsel %vm679, %v806, 0.0
    %v932 = vadd.f32 %v930, %v931
    %v933 = vsel %vm679, %v807, 0.0
    %v934 = vadd.f32 %v932, %v933
    %v935 = vrot.slane %v934, 4
    %v936 = vadd.f32 %v934, %v935
    %v937 = vrot.slane %v936, 2
    %v938 = vadd.f32 %v936, %v937
    %v939 = vrot.slane %v938, 1
    %v940 = vadd.f32 %v938, %v939
    %v941 = vmul.f32 %v940, 0.001953125
    %v942 = vmul.f32 %v744, %v744
    %v943 = vmul.f32 %v745, %v745
    %v944 = vmul.f32 %v746, %v746
    %v945 = vmul.f32 %v747, %v747
    %v946 = vmul.f32 %v748, %v748
    %v947 = vmul.f32 %v749, %v749
    %v948 = vmul.f32 %v750, %v750
    %v949 = vmul.f32 %v751, %v751
    %v950 = vmul.f32 %v752, %v752
    %v951 = vmul.f32 %v753, %v753
    %v952 = vmul.f32 %v754, %v754
    %v953 = vmul.f32 %v755, %v755
    %v954 = vmul.f32 %v756, %v756
    %v955 = vmul.f32 %v757, %v757
    %v956 = vmul.f32 %v758, %v758
    %v957 = vmul.f32 %v759, %v759
    %v958 = vmul.f32 %v760, %v760
    %v959 = vmul.f32 %v761, %v761
    %v960 = vmul.f32 %v762, %v762
    %v961 = vmul.f32 %v763, %v763
    %v962 = vmul.f32 %v764, %v764
    %v963 = vmul.f32 %v765, %v765
    %v964 = vmul.f32 %v766, %v766
    %v965 = vmul.f32 %v767, %v767
    %v966 = vmul.f32 %v768, %v768
    %v967 = vmul.f32 %v769, %v769
    %v968 = vmul.f32 %v770, %v770
    %v969 = vmul.f32 %v771, %v771
    %v970 = vmul.f32 %v772, %v772
    %v971 = vmul.f32 %v773, %v773
    %v972 = vmul.f32 %v774, %v774
    %v973 = vmul.f32 %v775, %v775
    %v974 = vmul.f32 %v776, %v776
    %v975 = vmul.f32 %v777, %v777
    %v976 = vmul.f32 %v778, %v778
    %v977 = vmul.f32 %v779, %v779
    %v978 = vmul.f32 %v780, %v780
    %v979 = vmul.f32 %v781, %v781
    %v980 = vmul.f32 %v782, %v782
    %v981 = vmul.f32 %v783, %v783
    %v982 = vmul.f32 %v784, %v784
    %v983 = vmul.f32 %v785, %v785
    %v984 = vmul.f32 %v786, %v786
    %v985 = vmul.f32 %v787, %v787
    %v986 = vmul.f32 %v788, %v788
    %v987 = vmul.f32 %v789, %v789
    %v988 = vmul.f32 %v790, %v790
    %v989 = vmul.f32 %v791, %v791
    %v990 = vmul.f32 %v792, %v792
    %v991 = vmul.f32 %v793, %v793
    %v992 = vmul.f32 %v794, %v794
    %v993 = vmul.f32 %v795, %v795
    %v994 = vmul.f32 %v796, %v796
    %v995 = vmul.f32 %v797, %v797
    %v996 = vmul.f32 %v798, %v798
    %v997 = vmul.f32 %v799, %v799
    %v998 = vmul.f32 %v800, %v800
    %v999 = vmul.f32 %v801, %v801
    %v1000 = vmul.f32 %v802, %v802
    %v1001 = vmul.f32 %v803, %v803
    %v1002 = vmul.f32 %v804, %v804
    %v1003 = vmul.f32 %v805, %v805
    %v1004 = vmul.f32 %v806, %v806
    %v1005 = vmul.f32 %v807, %v807
    %v1006 = vsel %vm679, %v942, 0.0
    %v1007 = vsel %vm679, %v943, 0.0
    %v1008 = vadd.f32 %v1006, %v1007
    %v1009 = vsel %vm679, %v944, 0.0
    %v1010 = vadd.f32 %v1008, %v1009
    %v1011 = vsel %vm679, %v945, 0.0
    %v1012 = vadd.f32 %v1010, %v1011
    %v1013 = vsel %vm679, %v946, 0.0
    %v1014 = vadd.f32 %v1012, %v1013
    %v1015 = vsel %vm679, %v947, 0.0
    %v1016 = vadd.f32 %v1014, %v1015
    %v1017 = vsel %vm679, %v948, 0.0
    %v1018 = vadd.f32 %v1016, %v1017
    %v1019 = vsel %vm679, %v949, 0.0
    %v1020 = vadd.f32 %v1018, %v1019
    %v1021 = vsel %vm679, %v950, 0.0
    %v1022 = vadd.f32 %v1020, %v1021
    %v1023 = vsel %vm679, %v951, 0.0
    %v1024 = vadd.f32 %v1022, %v1023
    %v1025 = vsel %vm679, %v952, 0.0
    %v1026 = vadd.f32 %v1024, %v1025
    %v1027 = vsel %vm679, %v953, 0.0
    %v1028 = vadd.f32 %v1026, %v1027
    %v1029 = vsel %vm679, %v954, 0.0
    %v1030 = vadd.f32 %v1028, %v1029
    %v1031 = vsel %vm679, %v955, 0.0
    %v1032 = vadd.f32 %v1030, %v1031
    %v1033 = vsel %vm679, %v956, 0.0
    %v1034 = vadd.f32 %v1032, %v1033
    %v1035 = vsel %vm679, %v957, 0.0
    %v1036 = vadd.f32 %v1034, %v1035
    %v1037 = vsel %vm679, %v958, 0.0
    %v1038 = vadd.f32 %v1036, %v1037
    %v1039 = vsel %vm679, %v959, 0.0
    %v1040 = vadd.f32 %v1038, %v1039
    %v1041 = vsel %vm679, %v960, 0.0
    %v1042 = vadd.f32 %v1040, %v1041
    %v1043 = vsel %vm679, %v961, 0.0
    %v1044 = vadd.f32 %v1042, %v1043
    %v1045 = vsel %vm679, %v962, 0.0
    %v1046 = vadd.f32 %v1044, %v1045
    %v1047 = vsel %vm679, %v963, 0.0
    %v1048 = vadd.f32 %v1046, %v1047
    %v1049 = vsel %vm679, %v964, 0.0
    %v1050 = vadd.f32 %v1048, %v1049
    %v1051 = vsel %vm679, %v965, 0.0
    %v1052 = vadd.f32 %v1050, %v1051
    %v1053 = vsel %vm679, %v966, 0.0
    %v1054 = vadd.f32 %v1052, %v1053
    %v1055 = vsel %vm679, %v967, 0.0
    %v1056 = vadd.f32 %v1054, %v1055
    %v1057 = vsel %vm679, %v968, 0.0
    %v1058 = vadd.f32 %v1056, %v1057
    %v1059 = vsel %vm679, %v969, 0.0
    %v1060 = vadd.f32 %v1058, %v1059
    %v1061 = vsel %vm679, %v970, 0.0
    %v1062 = vadd.f32 %v1060, %v1061
    %v1063 = vsel %vm679, %v971, 0.0
    %v1064 = vadd.f32 %v1062, %v1063
    %v1065 = vsel %vm679, %v972, 0.0
    %v1066 = vadd.f32 %v1064, %v1065
    %v1067 = vsel %vm679, %v973, 0.0
    %v1068 = vadd.f32 %v1066, %v1067
    %v1069 = vsel %vm679, %v974, 0.0
    %v1070 = vadd.f32 %v1068, %v1069
    %v1071 = vsel %vm679, %v975, 0.0
    %v1072 = vadd.f32 %v1070, %v1071
    %v1073 = vsel %vm679, %v976, 0.0
    %v1074 = vadd.f32 %v1072, %v1073
    %v1075 = vsel %vm679, %v977, 0.0
    %v1076 = vadd.f32 %v1074, %v1075
    %v1077 = vsel %vm679, %v978, 0.0
    %v1078 = vadd.f32 %v1076, %v1077
    %v1079 = vsel %vm679, %v979, 0.0
    %v1080 = vadd.f32 %v1078, %v1079
    %v1081 = vsel %vm679, %v980, 0.0
    %v1082 = vadd.f32 %v1080, %v1081
    %v1083 = vsel %vm679, %v981, 0.0
    %v1084 = vadd.f32 %v1082, %v1083
    %v1085 = vsel %vm679, %v982, 0.0
    %v1086 = vadd.f32 %v1084, %v1085
    %v1087 = vsel %vm679, %v983, 0.0
    %v1088 = vadd.f32 %v1086, %v1087
    %v1089 = vsel %vm679, %v984, 0.0
    %v1090 = vadd.f32 %v1088, %v1089
    %v1091 = vsel %vm679, %v985, 0.0
    %v1092 = vadd.f32 %v1090, %v1091
    %v1093 = vsel %vm679, %v986, 0.0
    %v1094 = vadd.f32 %v1092, %v1093
    %v1095 = vsel %vm679, %v987, 0.0
    %v1096 = vadd.f32 %v1094, %v1095
    %v1097 = vsel %vm679, %v988, 0.0
    %v1098 = vadd.f32 %v1096, %v1097
    %v1099 = vsel %vm679, %v989, 0.0
    %v1100 = vadd.f32 %v1098, %v1099
    %v1101 = vsel %vm679, %v990, 0.0
    %v1102 = vadd.f32 %v1100, %v1101
    %v1103 = vsel %vm679, %v991, 0.0
    %v1104 = vadd.f32 %v1102, %v1103
    %v1105 = vsel %vm679, %v992, 0.0
    %v1106 = vadd.f32 %v1104, %v1105
    %v1107 = vsel %vm679, %v993, 0.0
    %v1108 = vadd.f32 %v1106, %v1107
    %v1109 = vsel %vm679, %v994, 0.0
    %v1110 = vadd.f32 %v1108, %v1109
    %v1111 = vsel %vm679, %v995, 0.0
    %v1112 = vadd.f32 %v1110, %v1111
    %v1113 = vsel %vm679, %v996, 0.0
    %v1114 = vadd.f32 %v1112, %v1113
    %v1115 = vsel %vm679, %v997, 0.0
    %v1116 = vadd.f32 %v1114, %v1115
    %v1117 = vsel %vm679, %v998, 0.0
    %v1118 = vadd.f32 %v1116, %v1117
    %v1119 = vsel %vm679, %v999, 0.0
    %v1120 = vadd.f32 %v1118, %v1119
    %v1121 = vsel %vm679, %v1000, 0.0
    %v1122 = vadd.f32 %v1120, %v1121
    %v1123 = vsel %vm679, %v1001, 0.0
    %v1124 = vadd.f32 %v1122, %v1123
    %v1125 = vsel %vm679, %v1002, 0.0
    %v1126 = vadd.f32 %v1124, %v1125
    %v1127 = vsel %vm679, %v1003, 0.0
    %v1128 = vadd.f32 %v1126, %v1127
    %v1129 = vsel %vm679, %v1004, 0.0
    %v1130 = vadd.f32 %v1128, %v1129
    %v1131 = vsel %vm679, %v1005, 0.0
    %v1132 = vadd.f32 %v1130, %v1131
    %v1133 = vrot.slane %v1132, 4
    %v1134 = vadd.f32 %v1132, %v1133
    %v1135 = vrot.slane %v1134, 2
    %v1136 = vadd.f32 %v1134, %v1135
    %v1137 = vrot.slane %v1136, 1
    %v1138 = vadd.f32 %v1136, %v1137
    %v1139 = vmul.f32 %v1138, 0.001953125
    %v1140 = vmul.f32 %v941, %v941
    %v1141 = vsub.f32 %v1139, %v1140
    %v1142 = vmax.f32 %v1141, 0.0
    %v1143 = vsub.f32 %v744, %v941
    %v1144 = vsub.f32 %v745, %v941
    %v1145 = vsub.f32 %v746, %v941
    %v1146 = vsub.f32 %v747, %v941
    %v1147 = vsub.f32 %v748, %v941
    %v1148 = vsub.f32 %v749, %v941
    %v1149 = vsub.f32 %v750, %v941
    %v1150 = vsub.f32 %v751, %v941
    %v1151 = vsub.f32 %v752, %v941
    %v1152 = vsub.f32 %v753, %v941
    %v1153 = vsub.f32 %v754, %v941
    %v1154 = vsub.f32 %v755, %v941
    %v1155 = vsub.f32 %v756, %v941
    %v1156 = vsub.f32 %v757, %v941
    %v1157 = vsub.f32 %v758, %v941
    %v1158 = vsub.f32 %v759, %v941
    %v1159 = vsub.f32 %v760, %v941
    %v1160 = vsub.f32 %v761, %v941
    %v1161 = vsub.f32 %v762, %v941
    %v1162 = vsub.f32 %v763, %v941
    %v1163 = vsub.f32 %v764, %v941
    %v1164 = vsub.f32 %v765, %v941
    %v1165 = vsub.f32 %v766, %v941
    %v1166 = vsub.f32 %v767, %v941
    %v1167 = vsub.f32 %v768, %v941
    %v1168 = vsub.f32 %v769, %v941
    %v1169 = vsub.f32 %v770, %v941
    %v1170 = vsub.f32 %v771, %v941
    %v1171 = vsub.f32 %v772, %v941
    %v1172 = vsub.f32 %v773, %v941
    %v1173 = vsub.f32 %v774, %v941
    %v1174 = vsub.f32 %v775, %v941
    %v1175 = vsub.f32 %v776, %v941
    %v1176 = vsub.f32 %v777, %v941
    %v1177 = vsub.f32 %v778, %v941
    %v1178 = vsub.f32 %v779, %v941
    %v1179 = vsub.f32 %v780, %v941
    %v1180 = vsub.f32 %v781, %v941
    %v1181 = vsub.f32 %v782, %v941
    %v1182 = vsub.f32 %v783, %v941
    %v1183 = vsub.f32 %v784, %v941
    %v1184 = vsub.f32 %v785, %v941
    %v1185 = vsub.f32 %v786, %v941
    %v1186 = vsub.f32 %v787, %v941
    %v1187 = vsub.f32 %v788, %v941
    %v1188 = vsub.f32 %v789, %v941
    %v1189 = vsub.f32 %v790, %v941
    %v1190 = vsub.f32 %v791, %v941
    %v1191 = vsub.f32 %v792, %v941
    %v1192 = vsub.f32 %v793, %v941
    %v1193 = vsub.f32 %v794, %v941
    %v1194 = vsub.f32 %v795, %v941
    %v1195 = vsub.f32 %v796, %v941
    %v1196 = vsub.f32 %v797, %v941
    %v1197 = vsub.f32 %v798, %v941
    %v1198 = vsub.f32 %v799, %v941
    %v1199 = vsub.f32 %v800, %v941
    %v1200 = vsub.f32 %v801, %v941
    %v1201 = vsub.f32 %v802, %v941
    %v1202 = vsub.f32 %v803, %v941
    %v1203 = vsub.f32 %v804, %v941
    %v1204 = vsub.f32 %v805, %v941
    %v1205 = vsub.f32 %v806, %v941
    %v1206 = vsub.f32 %v807, %v941
    %v1207 = vadd.f32 %v1142, 1e-05
    %v1208 = vrsqrt.pop %v1207
    %v1209 = vmul.f32 %v1143, %v1208
    %v1210 = vmul.f32 %v1144, %v1208
    %v1211 = vmul.f32 %v1145, %v1208
    %v1212 = vmul.f32 %v1146, %v1208
    %v1213 = vmul.f32 %v1147, %v1208
    %v1214 = vmul.f32 %v1148, %v1208
    %v1215 = vmul.f32 %v1149, %v1208
    %v1216 = vmul.f32 %v1150, %v1208
    %v1217 = vmul.f32 %v1151, %v1208
    %v1218 = vmul.f32 %v1152, %v1208
    %v1219 = vmul.f32 %v1153, %v1208
    %v1220 = vmul.f32 %v1154, %v1208
    %v1221 = vmul.f32 %v1155, %v1208
    %v1222 = vmul.f32 %v1156, %v1208
    %v1223 = vmul.f32 %v1157, %v1208
    %v1224 = vmul.f32 %v1158, %v1208
    %v1225 = vmul.f32 %v1159, %v1208
    %v1226 = vmul.f32 %v1160, %v1208
    %v1227 = vmul.f32 %v1161, %v1208
    %v1228 = vmul.f32 %v1162, %v1208
    %v1229 = vmul.f32 %v1163, %v1208
    %v1230 = vmul.f32 %v1164, %v1208
    %v1231 = vmul.f32 %v1165, %v1208
    %v1232 = vmul.f32 %v1166, %v1208
    %v1233 = vmul.f32 %v1167, %v1208
    %v1234 = vmul.f32 %v1168, %v1208
    %v1235 = vmul.f32 %v1169, %v1208
    %v1236 = vmul.f32 %v1170, %v1208
    %v1237 = vmul.f32 %v1171, %v1208
    %v1238 = vmul.f32 %v1172, %v1208
    %v1239 = vmul.f32 %v1173, %v1208
    %v1240 = vmul.f32 %v1174, %v1208
    %v1241 = vmul.f32 %v1175, %v1208
    %v1242 = vmul.f32 %v1176, %v1208
    %v1243 = vmul.f32 %v1177, %v1208
    %v1244 = vmul.f32 %v1178, %v1208
    %v1245 = vmul.f32 %v1179, %v1208
    %v1246 = vmul.f32 %v1180, %v1208
    %v1247 = vmul.f32 %v1181, %v1208
    %v1248 = vmul.f32 %v1182, %v1208
    %v1249 = vmul.f32 %v1183, %v1208
    %v1250 = vmul.f32 %v1184, %v1208
    %v1251 = vmul.f32 %v1185, %v1208
    %v1252 = vmul.f32 %v1186, %v1208
    %v1253 = vmul.f32 %v1187, %v1208
    %v1254 = vmul.f32 %v1188, %v1208
    %v1255 = vmul.f32 %v1189, %v1208
    %v1256 = vmul.f32 %v1190, %v1208
    %v1257 = vmul.f32 %v1191, %v1208
    %v1258 = vmul.f32 %v1192, %v1208
    %v1259 = vmul.f32 %v1193, %v1208
    %v1260 = vmul.f32 %v1194, %v1208
    %v1261 = vmul.f32 %v1195, %v1208
    %v1262 = vmul.f32 %v1196, %v1208
    %v1263 = vmul.f32 %v1197, %v1208
    %v1264 = vmul.f32 %v1198, %v1208
    %v1265 = vmul.f32 %v1199, %v1208
    %v1266 = vmul.f32 %v1200, %v1208
    %v1267 = vmul.f32 %v1201, %v1208
    %v1268 = vmul.f32 %v1202, %v1208
    %v1269 = vmul.f32 %v1203, %v1208
    %v1270 = vmul.f32 %v1204, %v1208
    %v1271 = vmul.f32 %v1205, %v1208
    %v1272 = vmul.f32 %v1206, %v1208
    %v1273 = vld [vmem:[%s2] sm:$0x1]
    %v1275 = vlaneseq
    %v1276 = vshrl.u32 %v1275, 7
    %v1277 = vsub.s32 0, %v1276
    %v1278 = vrot.slane %v1273, %v1277
    %v1280 = vmul.f32 %v1209, %v1278
    %v1281 = vmul.f32 %v1210, %v1278
    %v1282 = vmul.f32 %v1211, %v1278
    %v1283 = vmul.f32 %v1212, %v1278
    %v1284 = vmul.f32 %v1213, %v1278
    %v1285 = vmul.f32 %v1214, %v1278
    %v1286 = vmul.f32 %v1215, %v1278
    %v1287 = vmul.f32 %v1216, %v1278
    %v1288 = vmul.f32 %v1217, %v1278
    %v1289 = vmul.f32 %v1218, %v1278
    %v1290 = vmul.f32 %v1219, %v1278
    %v1291 = vmul.f32 %v1220, %v1278
    %v1292 = vmul.f32 %v1221, %v1278
    %v1293 = vmul.f32 %v1222, %v1278
    %v1294 = vmul.f32 %v1223, %v1278
    %v1295 = vmul.f32 %v1224, %v1278
    %v1296 = vmul.f32 %v1225, %v1278
    %v1297 = vmul.f32 %v1226, %v1278
    %v1298 = vmul.f32 %v1227, %v1278
    %v1299 = vmul.f32 %v1228, %v1278
    %v1300 = vmul.f32 %v1229, %v1278
    %v1301 = vmul.f32 %v1230, %v1278
    %v1302 = vmul.f32 %v1231, %v1278
    %v1303 = vmul.f32 %v1232, %v1278
    %v1304 = vmul.f32 %v1233, %v1278
    %v1305 = vmul.f32 %v1234, %v1278
    %v1306 = vmul.f32 %v1235, %v1278
    %v1307 = vmul.f32 %v1236, %v1278
    %v1308 = vmul.f32 %v1237, %v1278
    %v1309 = vmul.f32 %v1238, %v1278
    %v1310 = vmul.f32 %v1239, %v1278
    %v1311 = vmul.f32 %v1240, %v1278
    %v1312 = vmul.f32 %v1241, %v1278
    %v1313 = vmul.f32 %v1242, %v1278
    %v1314 = vmul.f32 %v1243, %v1278
    %v1315 = vmul.f32 %v1244, %v1278
    %v1316 = vmul.f32 %v1245, %v1278
    %v1317 = vmul.f32 %v1246, %v1278
    %v1318 = vmul.f32 %v1247, %v1278
    %v1319 = vmul.f32 %v1248, %v1278
    %v1320 = vmul.f32 %v1249, %v1278
    %v1321 = vmul.f32 %v1250, %v1278
    %v1322 = vmul.f32 %v1251, %v1278
    %v1323 = vmul.f32 %v1252, %v1278
    %v1324 = vmul.f32 %v1253, %v1278
    %v1325 = vmul.f32 %v1254, %v1278
    %v1326 = vmul.f32 %v1255, %v1278
    %v1327 = vmul.f32 %v1256, %v1278
    %v1328 = vmul.f32 %v1257, %v1278
    %v1329 = vmul.f32 %v1258, %v1278
    %v1330 = vmul.f32 %v1259, %v1278
    %v1331 = vmul.f32 %v1260, %v1278
    %v1332 = vmul.f32 %v1261, %v1278
    %v1333 = vmul.f32 %v1262, %v1278
    %v1334 = vmul.f32 %v1263, %v1278
    %v1335 = vmul.f32 %v1264, %v1278
    %v1336 = vmul.f32 %v1265, %v1278
    %v1337 = vmul.f32 %v1266, %v1278
    %v1338 = vmul.f32 %v1267, %v1278
    %v1339 = vmul.f32 %v1268, %v1278
    %v1340 = vmul.f32 %v1269, %v1278
    %v1341 = vmul.f32 %v1270, %v1278
    %v1342 = vmul.f32 %v1271, %v1278
    %v1343 = vmul.f32 %v1272, %v1278
    %v1344 = vld [vmem:[%s3] sm:$0x1]
    %v1346 = vlaneseq
    %v1347 = vshrl.u32 %v1346, 7
    %v1348 = vsub.s32 0, %v1347
    %v1349 = vrot.slane %v1344, %v1348
    %v1351 = vadd.f32 %v1280, %v1349
    %v1352 = vadd.f32 %v1281, %v1349
    %v1353 = vadd.f32 %v1282, %v1349
    %v1354 = vadd.f32 %v1283, %v1349
    %v1355 = vadd.f32 %v1284, %v1349
    %v1356 = vadd.f32 %v1285, %v1349
    %v1357 = vadd.f32 %v1286, %v1349
    %v1358 = vadd.f32 %v1287, %v1349
    %v1359 = vadd.f32 %v1288, %v1349
    %v1360 = vadd.f32 %v1289, %v1349
    %v1361 = vadd.f32 %v1290, %v1349
    %v1362 = vadd.f32 %v1291, %v1349
    %v1363 = vadd.f32 %v1292, %v1349
    %v1364 = vadd.f32 %v1293, %v1349
    %v1365 = vadd.f32 %v1294, %v1349
    %v1366 = vadd.f32 %v1295, %v1349
    %v1367 = vadd.f32 %v1296, %v1349
    %v1368 = vadd.f32 %v1297, %v1349
    %v1369 = vadd.f32 %v1298, %v1349
    %v1370 = vadd.f32 %v1299, %v1349
    %v1371 = vadd.f32 %v1300, %v1349
    %v1372 = vadd.f32 %v1301, %v1349
    %v1373 = vadd.f32 %v1302, %v1349
    %v1374 = vadd.f32 %v1303, %v1349
    %v1375 = vadd.f32 %v1304, %v1349
    %v1376 = vadd.f32 %v1305, %v1349
    %v1377 = vadd.f32 %v1306, %v1349
    %v1378 = vadd.f32 %v1307, %v1349
    %v1379 = vadd.f32 %v1308, %v1349
    %v1380 = vadd.f32 %v1309, %v1349
    %v1381 = vadd.f32 %v1310, %v1349
    %v1382 = vadd.f32 %v1311, %v1349
    %v1383 = vadd.f32 %v1312, %v1349
    %v1384 = vadd.f32 %v1313, %v1349
    %v1385 = vadd.f32 %v1314, %v1349
    %v1386 = vadd.f32 %v1315, %v1349
    %v1387 = vadd.f32 %v1316, %v1349
    %v1388 = vadd.f32 %v1317, %v1349
    %v1389 = vadd.f32 %v1318, %v1349
    %v1390 = vadd.f32 %v1319, %v1349
    %v1391 = vadd.f32 %v1320, %v1349
    %v1392 = vadd.f32 %v1321, %v1349
    %v1393 = vadd.f32 %v1322, %v1349
    %v1394 = vadd.f32 %v1323, %v1349
    %v1395 = vadd.f32 %v1324, %v1349
    %v1396 = vadd.f32 %v1325, %v1349
    %v1397 = vadd.f32 %v1326, %v1349
    %v1398 = vadd.f32 %v1327, %v1349
    %v1399 = vadd.f32 %v1328, %v1349
    %v1400 = vadd.f32 %v1329, %v1349
    %v1401 = vadd.f32 %v1330, %v1349
    %v1402 = vadd.f32 %v1331, %v1349
    %v1403 = vadd.f32 %v1332, %v1349
    %v1404 = vadd.f32 %v1333, %v1349
    %v1405 = vadd.f32 %v1334, %v1349
    %v1406 = vadd.f32 %v1335, %v1349
    %v1407 = vadd.f32 %v1336, %v1349
    %v1408 = vadd.f32 %v1337, %v1349
    %v1409 = vadd.f32 %v1338, %v1349
    %v1410 = vadd.f32 %v1339, %v1349
    %v1411 = vadd.f32 %v1340, %v1349
    %v1412 = vadd.f32 %v1341, %v1349
    %v1413 = vadd.f32 %v1342, %v1349
    %v1414 = vadd.f32 %v1343, %v1349
    %v1415 = vmax.f32 %v1351, 0.0
    %v1416 = vmax.f32 %v1352, 0.0
    %v1417 = vmax.f32 %v1353, 0.0
    %v1418 = vmax.f32 %v1354, 0.0
    %v1419 = vmax.f32 %v1355, 0.0
    %v1420 = vmax.f32 %v1356, 0.0
    %v1421 = vmax.f32 %v1357, 0.0
    %v1422 = vmax.f32 %v1358, 0.0
    %v1423 = vmax.f32 %v1359, 0.0
    %v1424 = vmax.f32 %v1360, 0.0
    %v1425 = vmax.f32 %v1361, 0.0
    %v1426 = vmax.f32 %v1362, 0.0
    %v1427 = vmax.f32 %v1363, 0.0
    %v1428 = vmax.f32 %v1364, 0.0
    %v1429 = vmax.f32 %v1365, 0.0
    %v1430 = vmax.f32 %v1366, 0.0
    %v1431 = vmax.f32 %v1367, 0.0
    %v1432 = vmax.f32 %v1368, 0.0
    %v1433 = vmax.f32 %v1369, 0.0
    %v1434 = vmax.f32 %v1370, 0.0
    %v1435 = vmax.f32 %v1371, 0.0
    %v1436 = vmax.f32 %v1372, 0.0
    %v1437 = vmax.f32 %v1373, 0.0
    %v1438 = vmax.f32 %v1374, 0.0
    %v1439 = vmax.f32 %v1375, 0.0
    %v1440 = vmax.f32 %v1376, 0.0
    %v1441 = vmax.f32 %v1377, 0.0
    %v1442 = vmax.f32 %v1378, 0.0
    %v1443 = vmax.f32 %v1379, 0.0
    %v1444 = vmax.f32 %v1380, 0.0
    %v1445 = vmax.f32 %v1381, 0.0
    %v1446 = vmax.f32 %v1382, 0.0
    %v1447 = vmax.f32 %v1383, 0.0
    %v1448 = vmax.f32 %v1384, 0.0
    %v1449 = vmax.f32 %v1385, 0.0
    %v1450 = vmax.f32 %v1386, 0.0
    %v1451 = vmax.f32 %v1387, 0.0
    %v1452 = vmax.f32 %v1388, 0.0
    %v1453 = vmax.f32 %v1389, 0.0
    %v1454 = vmax.f32 %v1390, 0.0
    %v1455 = vmax.f32 %v1391, 0.0
    %v1456 = vmax.f32 %v1392, 0.0
    %v1457 = vmax.f32 %v1393, 0.0
    %v1458 = vmax.f32 %v1394, 0.0
    %v1459 = vmax.f32 %v1395, 0.0
    %v1460 = vmax.f32 %v1396, 0.0
    %v1461 = vmax.f32 %v1397, 0.0
    %v1462 = vmax.f32 %v1398, 0.0
    %v1463 = vmax.f32 %v1399, 0.0
    %v1464 = vmax.f32 %v1400, 0.0
    %v1465 = vmax.f32 %v1401, 0.0
    %v1466 = vmax.f32 %v1402, 0.0
    %v1467 = vmax.f32 %v1403, 0.0
    %v1468 = vmax.f32 %v1404, 0.0
    %v1469 = vmax.f32 %v1405, 0.0
    %v1470 = vmax.f32 %v1406, 0.0
    %v1471 = vmax.f32 %v1407, 0.0
    %v1472 = vmax.f32 %v1408, 0.0
    %v1473 = vmax.f32 %v1409, 0.0
    %v1474 = vmax.f32 %v1410, 0.0
    %v1475 = vmax.f32 %v1411, 0.0
    %v1476 = vmax.f32 %v1412, 0.0
    %v1477 = vmax.f32 %v1413, 0.0
    %v1478 = vmax.f32 %v1414, 0.0
    %v1479 = vpack.c.bf16 %v1416, %v1415
    %v1480 = vpack.c.bf16 %v1418, %v1417
    %v1481 = vpack.c.bf16 %v1420, %v1419
    %v1482 = vpack.c.bf16 %v1422, %v1421
    %v1483 = vpack.c.bf16 %v1424, %v1423
    %v1484 = vpack.c.bf16 %v1426, %v1425
    %v1485 = vpack.c.bf16 %v1428, %v1427
    %v1486 = vpack.c.bf16 %v1430, %v1429
    %v1487 = vpack.c.bf16 %v1432, %v1431
    %v1488 = vpack.c.bf16 %v1434, %v1433
    %v1489 = vpack.c.bf16 %v1436, %v1435
    %v1490 = vpack.c.bf16 %v1438, %v1437
    %v1491 = vpack.c.bf16 %v1440, %v1439
    %v1492 = vpack.c.bf16 %v1442, %v1441
    %v1493 = vpack.c.bf16 %v1444, %v1443
    %v1494 = vpack.c.bf16 %v1446, %v1445
    %v1495 = vpack.c.bf16 %v1448, %v1447
    %v1496 = vpack.c.bf16 %v1450, %v1449
    %v1497 = vpack.c.bf16 %v1452, %v1451
    %v1498 = vpack.c.bf16 %v1454, %v1453
    %v1499 = vpack.c.bf16 %v1456, %v1455
    %v1500 = vpack.c.bf16 %v1458, %v1457
    %v1501 = vpack.c.bf16 %v1460, %v1459
    %v1502 = vpack.c.bf16 %v1462, %v1461
    %v1503 = vpack.c.bf16 %v1464, %v1463
    %v1504 = vpack.c.bf16 %v1466, %v1465
    %v1505 = vpack.c.bf16 %v1468, %v1467
    %v1506 = vpack.c.bf16 %v1470, %v1469
    %v1507 = vpack.c.bf16 %v1472, %v1471
    %v1508 = vpack.c.bf16 %v1474, %v1473
    %v1509 = vpack.c.bf16 %v1476, %v1475
    %v1510 = vpack.c.bf16 %v1478, %v1477
    %v1543 = vunpack.c.l.b16 %v1479
    %v1544 = vunpack.c.h.b16 %v1479
    %v1545 = vunpack.c.l.b16 %v1480
    %v1546 = vunpack.c.h.b16 %v1480
    %v1547 = vunpack.c.l.b16 %v1481
    %v1548 = vunpack.c.h.b16 %v1481
    %v1549 = vunpack.c.l.b16 %v1482
    %v1550 = vunpack.c.h.b16 %v1482
    %v1551 = vunpack.c.l.b16 %v1483
    %v1552 = vunpack.c.h.b16 %v1483
    %v1553 = vunpack.c.l.b16 %v1484
    %v1554 = vunpack.c.h.b16 %v1484
    %v1555 = vunpack.c.l.b16 %v1485
    %v1556 = vunpack.c.h.b16 %v1485
    %v1557 = vunpack.c.l.b16 %v1486
    %v1558 = vunpack.c.h.b16 %v1486
    %v1559 = vunpack.c.l.b16 %v1487
    %v1560 = vunpack.c.h.b16 %v1487
    %v1561 = vunpack.c.l.b16 %v1488
    %v1562 = vunpack.c.h.b16 %v1488
    %v1563 = vunpack.c.l.b16 %v1489
    %v1564 = vunpack.c.h.b16 %v1489
    %v1565 = vunpack.c.l.b16 %v1490
    %v1566 = vunpack.c.h.b16 %v1490
    %v1567 = vunpack.c.l.b16 %v1491
    %v1568 = vunpack.c.h.b16 %v1491
    %v1569 = vunpack.c.l.b16 %v1492
    %v1570 = vunpack.c.h.b16 %v1492
    %v1571 = vunpack.c.l.b16 %v1493
    %v1572 = vunpack.c.h.b16 %v1493
    %v1573 = vunpack.c.l.b16 %v1494
    %v1574 = vunpack.c.h.b16 %v1494
    %v1575 = vunpack.c.l.b16 %v1495
    %v1576 = vunpack.c.h.b16 %v1495
    %v1577 = vunpack.c.l.b16 %v1496
    %v1578 = vunpack.c.h.b16 %v1496
    %v1579 = vunpack.c.l.b16 %v1497
    %v1580 = vunpack.c.h.b16 %v1497
    %v1581 = vunpack.c.l.b16 %v1498
    %v1582 = vunpack.c.h.b16 %v1498
    %v1583 = vunpack.c.l.b16 %v1499
    %v1584 = vunpack.c.h.b16 %v1499
    %v1585 = vunpack.c.l.b16 %v1500
    %v1586 = vunpack.c.h.b16 %v1500
    %v1587 = vunpack.c.l.b16 %v1501
    %v1588 = vunpack.c.h.b16 %v1501
    %v1589 = vunpack.c.l.b16 %v1502
    %v1590 = vunpack.c.h.b16 %v1502
    %v1591 = vunpack.c.l.b16 %v1503
    %v1592 = vunpack.c.h.b16 %v1503
    %v1593 = vunpack.c.l.b16 %v1504
    %v1594 = vunpack.c.h.b16 %v1504
    %v1595 = vunpack.c.l.b16 %v1505
    %v1596 = vunpack.c.h.b16 %v1505
    %v1597 = vunpack.c.l.b16 %v1506
    %v1598 = vunpack.c.h.b16 %v1506
    %v1599 = vunpack.c.l.b16 %v1507
    %v1600 = vunpack.c.h.b16 %v1507
    %v1601 = vunpack.c.l.b16 %v1508
    %v1602 = vunpack.c.h.b16 %v1508
    %v1603 = vunpack.c.l.b16 %v1509
    %v1604 = vunpack.c.h.b16 %v1509
    %v1605 = vunpack.c.l.b16 %v1510
    %v1606 = vunpack.c.h.b16 %v1510
    %v1607 = vpack.c.b16 %v1543, %v1543
    %v1608 = vpack.c.b16 %v1544, %v1544
    %v1609 = vpack.c.b16 %v1545, %v1545
    %v1610 = vpack.c.b16 %v1546, %v1546
    %v1611 = vpack.c.b16 %v1547, %v1547
    %v1612 = vpack.c.b16 %v1548, %v1548
    %v1613 = vpack.c.b16 %v1549, %v1549
    %v1614 = vpack.c.b16 %v1550, %v1550
    %v1615 = vpack.c.b16 %v1551, %v1551
    %v1616 = vpack.c.b16 %v1552, %v1552
    %v1617 = vpack.c.b16 %v1553, %v1553
    %v1618 = vpack.c.b16 %v1554, %v1554
    %v1619 = vpack.c.b16 %v1555, %v1555
    %v1620 = vpack.c.b16 %v1556, %v1556
    %v1621 = vpack.c.b16 %v1557, %v1557
    %v1622 = vpack.c.b16 %v1558, %v1558
    %v1623 = vpack.c.b16 %v1559, %v1559
    %v1624 = vpack.c.b16 %v1560, %v1560
    %v1625 = vpack.c.b16 %v1561, %v1561
    %v1626 = vpack.c.b16 %v1562, %v1562
    %v1627 = vpack.c.b16 %v1563, %v1563
    %v1628 = vpack.c.b16 %v1564, %v1564
    %v1629 = vpack.c.b16 %v1565, %v1565
    %v1630 = vpack.c.b16 %v1566, %v1566
    %v1631 = vpack.c.b16 %v1567, %v1567
    %v1632 = vpack.c.b16 %v1568, %v1568
    %v1633 = vpack.c.b16 %v1569, %v1569
    %v1634 = vpack.c.b16 %v1570, %v1570
    %v1635 = vpack.c.b16 %v1571, %v1571
    %v1636 = vpack.c.b16 %v1572, %v1572
    %v1637 = vpack.c.b16 %v1573, %v1573
    %v1638 = vpack.c.b16 %v1574, %v1574
    %v1639 = vpack.c.b16 %v1575, %v1575
    %v1640 = vpack.c.b16 %v1576, %v1576
    %v1641 = vpack.c.b16 %v1577, %v1577
    %v1642 = vpack.c.b16 %v1578, %v1578
    %v1643 = vpack.c.b16 %v1579, %v1579
    %v1644 = vpack.c.b16 %v1580, %v1580
    %v1645 = vpack.c.b16 %v1581, %v1581
    %v1646 = vpack.c.b16 %v1582, %v1582
    %v1647 = vpack.c.b16 %v1583, %v1583
    %v1648 = vpack.c.b16 %v1584, %v1584
    %v1649 = vpack.c.b16 %v1585, %v1585
    %v1650 = vpack.c.b16 %v1586, %v1586
    %v1651 = vpack.c.b16 %v1587, %v1587
    %v1652 = vpack.c.b16 %v1588, %v1588
    %v1653 = vpack.c.b16 %v1589, %v1589
    %v1654 = vpack.c.b16 %v1590, %v1590
    %v1655 = vpack.c.b16 %v1591, %v1591
    %v1656 = vpack.c.b16 %v1592, %v1592
    %v1657 = vpack.c.b16 %v1593, %v1593
    %v1658 = vpack.c.b16 %v1594, %v1594
    %v1659 = vpack.c.b16 %v1595, %v1595
    %v1660 = vpack.c.b16 %v1596, %v1596
    %v1661 = vpack.c.b16 %v1597, %v1597
    %v1662 = vpack.c.b16 %v1598, %v1598
    %v1663 = vpack.c.b16 %v1599, %v1599
    %v1664 = vpack.c.b16 %v1600, %v1600
    %v1665 = vpack.c.b16 %v1601, %v1601
    %v1666 = vpack.c.b16 %v1602, %v1602
    %v1667 = vpack.c.b16 %v1603, %v1603
    %v1668 = vpack.c.b16 %v1604, %v1604
    %v1669 = vpack.c.b16 %v1605, %v1605
    %v1670 = vpack.c.b16 %v1606, %v1606
    %vm1735 = vcmask 519168
    %1736 = vst.msk [vmem:[#allocation8] sm:$0xf] %vm1735, %v1607
    %1737 = vst.msk [vmem:[#allocation8 + $0x4] sm:$0xf] %vm1735, %v1608
    %1738 = vst.msk [vmem:[#allocation8 + $0x8] sm:$0xf] %vm1735, %v1609
    %1739 = vst.msk [vmem:[#allocation8 + $0xc] sm:$0xf] %vm1735, %v1610
    %1740 = vst.msk [vmem:[#allocation8 + $0x10] sm:$0xf] %vm1735, %v1611
    %1741 = vst.msk [vmem:[#allocation8 + $0x14] sm:$0xf] %vm1735, %v1612
    %1742 = vst.msk [vmem:[#allocation8 + $0x18] sm:$0xf] %vm1735, %v1613
    %1743 = vst.msk [vmem:[#allocation8 + $0x1c] sm:$0xf] %vm1735, %v1614
    %1744 = vst.msk [vmem:[#allocation8 + $0x20] sm:$0xf] %vm1735, %v1615
    %1745 = vst.msk [vmem:[#allocation8 + $0x24] sm:$0xf] %vm1735, %v1616
    %1746 = vst.msk [vmem:[#allocation8 + $0x28] sm:$0xf] %vm1735, %v1617
    %1747 = vst.msk [vmem:[#allocation8 + $0x2c] sm:$0xf] %vm1735, %v1618
    %1748 = vst.msk [vmem:[#allocation8 + $0x30] sm:$0xf] %vm1735, %v1619
    %1749 = vst.msk [vmem:[#allocation8 + $0x34] sm:$0xf] %vm1735, %v1620
    %1750 = vst.msk [vmem:[#allocation8 + $0x38] sm:$0xf] %vm1735, %v1621
    %1751 = vst.msk [vmem:[#allocation8 + $0x3c] sm:$0xf] %vm1735, %v1622
    %1752 = vst.msk [vmem:[#allocation8 + $0x40] sm:$0xf] %vm1735, %v1623
    %1753 = vst.msk [vmem:[#allocation8 + $0x44] sm:$0xf] %vm1735, %v1624
    %1754 = vst.msk [vmem:[#allocation8 + $0x48] sm:$0xf] %vm1735, %v1625
    %1755 = vst.msk [vmem:[#allocation8 + $0x4c] sm:$0xf] %vm1735, %v1626
    %1756 = vst.msk [vmem:[#allocation8 + $0x50] sm:$0xf] %vm1735, %v1627
    %1757 = vst.msk [vmem:[#allocation8 + $0x54] sm:$0xf] %vm1735, %v1628
    %1758 = vst.msk [vmem:[#allocation8 + $0x58] sm:$0xf] %vm1735, %v1629
    %1759 = vst.msk [vmem:[#allocation8 + $0x5c] sm:$0xf] %vm1735, %v1630
    %1760 = vst.msk [vmem:[#allocation8 + $0x60] sm:$0xf] %vm1735, %v1631
    %1761 = vst.msk [vmem:[#allocation8 + $0x64] sm:$0xf] %vm1735, %v1632
    %1762 = vst.msk [vmem:[#allocation8 + $0x68] sm:$0xf] %vm1735, %v1633
    %1763 = vst.msk [vmem:[#allocation8 + $0x6c] sm:$0xf] %vm1735, %v1634
    %1764 = vst.msk [vmem:[#allocation8 + $0x70] sm:$0xf] %vm1735, %v1635
    %1765 = vst.msk [vmem:[#allocation8 + $0x74] sm:$0xf] %vm1735, %v1636
    %1766 = vst.msk [vmem:[#allocation8 + $0x78] sm:$0xf] %vm1735, %v1637
    %1767 = vst.msk [vmem:[#allocation8 + $0x7c] sm:$0xf] %vm1735, %v1638
    %1768 = vst.msk [vmem:[#allocation8 + $0x80] sm:$0xf] %vm1735, %v1639
    %1769 = vst.msk [vmem:[#allocation8 + $0x84] sm:$0xf] %vm1735, %v1640
    %1770 = vst.msk [vmem:[#allocation8 + $0x88] sm:$0xf] %vm1735, %v1641
    %1771 = vst.msk [vmem:[#allocation8 + $0x8c] sm:$0xf] %vm1735, %v1642
    %1772 = vst.msk [vmem:[#allocation8 + $0x90] sm:$0xf] %vm1735, %v1643
    %1773 = vst.msk [vmem:[#allocation8 + $0x94] sm:$0xf] %vm1735, %v1644
    %1774 = vst.msk [vmem:[#allocation8 + $0x98] sm:$0xf] %vm1735, %v1645
    %1775 = vst.msk [vmem:[#allocation8 + $0x9c] sm:$0xf] %vm1735, %v1646
    %1776 = vst.msk [vmem:[#allocation8 + $0xa0] sm:$0xf] %vm1735, %v1647
    %1777 = vst.msk [vmem:[#allocation8 + $0xa4] sm:$0xf] %vm1735, %v1648
    %1778 = vst.msk [vmem:[#allocation8 + $0xa8] sm:$0xf] %vm1735, %v1649
    %1779 = vst.msk [vmem:[#allocation8 + $0xac] sm:$0xf] %vm1735, %v1650
    %1780 = vst.msk [vmem:[#allocation8 + $0xb0] sm:$0xf] %vm1735, %v1651
    %1781 = vst.msk [vmem:[#allocation8 + $0xb4] sm:$0xf] %vm1735, %v1652
    %1782 = vst.msk [vmem:[#allocation8 + $0xb8] sm:$0xf] %vm1735, %v1653
    %1783 = vst.msk [vmem:[#allocation8 + $0xbc] sm:$0xf] %vm1735, %v1654
    %1784 = vst.msk [vmem:[#allocation8 + $0xc0] sm:$0xf] %vm1735, %v1655
    %1785 = vst.msk [vmem:[#allocation8 + $0xc4] sm:$0xf] %vm1735, %v1656
    %1786 = vst.msk [vmem:[#allocation8 + $0xc8] sm:$0xf] %vm1735, %v1657
    %1787 = vst.msk [vmem:[#allocation8 + $0xcc] sm:$0xf] %vm1735, %v1658
    %1788 = vst.msk [vmem:[#allocation8 + $0xd0] sm:$0xf] %vm1735, %v1659
    %1789 = vst.msk [vmem:[#allocation8 + $0xd4] sm:$0xf] %vm1735, %v1660
    %1790 = vst.msk [vmem:[#allocation8 + $0xd8] sm:$0xf] %vm1735, %v1661
    %1791 = vst.msk [vmem:[#allocation8 + $0xdc] sm:$0xf] %vm1735, %v1662
    %1792 = vst.msk [vmem:[#allocation8 + $0xe0] sm:$0xf] %vm1735, %v1663
    %1793 = vst.msk [vmem:[#allocation8 + $0xe4] sm:$0xf] %vm1735, %v1664
    %1794 = vst.msk [vmem:[#allocation8 + $0xe8] sm:$0xf] %vm1735, %v1665
    %1795 = vst.msk [vmem:[#allocation8 + $0xec] sm:$0xf] %vm1735, %v1666
    %1796 = vst.msk [vmem:[#allocation8 + $0xf0] sm:$0xf] %vm1735, %v1667
    %1797 = vst.msk [vmem:[#allocation8 + $0xf4] sm:$0xf] %vm1735, %v1668
    %1798 = vst.msk [vmem:[#allocation8 + $0xf8] sm:$0xf] %vm1735, %v1669
    %1799 = vst.msk [vmem:[#allocation8 + $0xfc] sm:$0xf] %vm1735, %v1670
    // Predicated region
    $region26: #{tpu_custom_call.1} parent=1 // pred_check
      _
    $region27: #{tpu_custom_call.1} parent=1 // pred_check_branch
      %1801 = sbr.rel (0) target = $region29
    $region28: #{tpu_custom_call.1} parent=1 // pred_region
      %s1803 = ssub.s32 4096, 4096
      %1804 = vsyncadd [#allocation5], %s1803
      %s1805 = sshll.u32 [#allocation8], 4
      %s1806 = int_to_ptr.vmem [resolvable:$true] %s1805
      %1811 = dma.vmem_to_hbm [thread:$0]  %s1806, 4096, %s4, [#allocation5], 64, 64, 4
    $region29: #{tpu_custom_call.1} parent=1 // pred_fallthru
      _
    // Predicated region
    $region30: #{tpu_custom_call.1} parent=1 // pred_check
      _
    $region31: #{tpu_custom_call.1} parent=1 // pred_check_branch
      %1813 = sbr.rel (0) target = $region33
    $region32: #{tpu_custom_call.1} parent=1 // pred_region
      %1814 = dma.done [#allocation5], 4096
    $region33: #{tpu_custom_call.1} parent=1 // pred_fallthru
      _
    %1815 = vsyncpa [#allocation4], 1
    %1816 = vsyncpa [#allocation7], 1
    %1817 = vsyncpa [#allocation5], 1

</llo_original>
